<compile_context>
chip_gen: v5e
topology: v5e:2x2
jax: 0.10.0
libtpu: 0.0.40
codegen_flags: <defaults>
</compile_context>

<pallas_src>
import functools
import math

import jax
import jax.numpy as jnp
from jax import lax
from jax.experimental import pallas as pl
from jax.experimental.pallas import tpu as pltpu


_NEG_INF = -1e30


def _pad(n, m):
    return (n + m - 1) // m * m


def _gelu_tanh(x):
    c = math.sqrt(2.0 / math.pi)
    return 0.5 * x * (1.0 + jnp.tanh(c * (x + 0.044715 * x * x * x)))


def _layer_norm(v, g, b, eps=1e-5):
    mu = jnp.mean(v, axis=-1, keepdims=True)
    var = jnp.mean((v - mu) ** 2, axis=-1, keepdims=True)
    return (v - mu) * lax.rsqrt(var + eps) * g + b


# ---------------------------------------------------------------------------
# Kernel
# ---------------------------------------------------------------------------
def block_kernel(n_head, t_q, compute_dtype,
                 x_ref, ln1g, ln1b, wq, bq, wkv, bkv, wproj, bproj,
                 ln2g, ln2b, wfc, bfc, wfc2, bfc2,
                 out_ref,
                 hf_cache, k_cache, v_cache, m_scr, l_scr, acc_scr):
    """Grid point (b, i): query rows [i*t_q, (i+1)*t_q) of batch element b."""
    i = pl.program_id(1)
    T, C = x_ref.shape[1], x_ref.shape[2]
    H = n_head
    hd = C // H
    n_tiles = T // t_q
    cdt = compute_dtype

    # ---- once per batch element: chunked ln_1 + fused K/V projection -------
    @pl.when(i == 0)
    def _build_caches():
        @pl.loop(0, n_tiles)
        def _chunk(r):
            r0 = pl.multiple_of(r * t_q, t_q)
            xc = x_ref[0, pl.ds(r0, t_q), :]                        # (TQ,C) f32
            hc = _layer_norm(xc, ln1g[...], ln1b[...]).astype(cdt)
            hf_cache[r] = hc
            kv = jnp.dot(hc, wkv[...],
                         preferred_element_type=jnp.float32) + bkv[...]
            kc = kv[:, :C].astype(cdt)                              # (TQ, C)
            vc = kv[:, C:].astype(cdt)                              # (TQ, C)
            # head-major layouts via one 2-D transpose + leading-dim reshape
            # (+ one batched swap for V); no per-head loop / narrow stores.
            k_cache[r] = kc.T.reshape(H, hd, t_q)                   # (H,hd,TQ)
            v_cache[r] = jnp.swapaxes(vc.T.reshape(H, hd, t_q), 1, 2)  # (H,TQ,hd)

    # ---- this step's query tile --------------------------------------------
    row0 = pl.multiple_of(i * t_q, t_q)
    x_t = x_ref[0, pl.ds(row0, t_q), :]                             # (TQ,C) f32
    h_q = hf_cache[i]                                               # (TQ,C) cdt
    # 1/sqrt(hd) is pre-folded into wq/bq on the host.
    q = jnp.dot(h_q, wq[...], preferred_element_type=jnp.float32) + bq[...]
    q3 = jnp.swapaxes(q.astype(cdt).T.reshape(H, hd, t_q), 1, 2)    # (H,TQ,hd)

    # flash state in scratch refs (no big fori_loop carries -> no spill churn)
    m_scr[...] = jnp.full(m_scr.shape, _NEG_INF, m_scr.dtype)
    l_scr[...] = jnp.zeros(l_scr.shape, l_scr.dtype)
    acc_scr[...] = jnp.zeros(acc_scr.shape, acc_scr.dtype)

    def _attend(j, masked):
        k_t = k_cache[j]                                            # (H,hd,TK)
        v_t = v_cache[j]                                            # (H,TK,hd)
        s = jnp.einsum('hqd,hdk->hqk', q3, k_t,
                       preferred_element_type=jnp.float32)          # (H,TQ,TK)
        if masked:  # only the diagonal tile needs the causal mask
            rows = lax.broadcasted_iota(jnp.int32, (t_q, t_q), 0)
            cols = lax.broadcasted_iota(jnp.int32, (t_q, t_q), 1)
            s = jnp.where((rows >= cols)[None], s, _NEG_INF)
        m_prev = m_scr[...]
        m_new = jnp.maximum(m_prev, jnp.max(s, axis=-1, keepdims=True))
        alpha = jnp.exp(m_prev - m_new)
        p = jnp.exp(s - m_new)
        l_scr[...] = alpha * l_scr[...] + jnp.sum(p, axis=-1, keepdims=True)
        acc_scr[...] = alpha * acc_scr[...] + jnp.einsum(
            'hqk,hkd->hqd', p.astype(cdt), v_t,
            preferred_element_type=jnp.float32)
        m_scr[...] = m_new

    # full (un-masked) KV tiles strictly below the diagonal
    @pl.loop(0, i)
    def _full_tiles(j):
        _attend(j, masked=False)

    # masked diagonal tile
    _attend(i, masked=True)

    # softmax normalization: EUP reciprocal + one Newton step (~f32 accurate)
    l = l_scr[...]
    inv_l = pl.reciprocal(l, approx=True)
    inv_l = inv_l * (2.0 - l * inv_l)
    o = (acc_scr[...] * inv_l).astype(cdt)                          # (H,TQ,hd)
    o_rows = jnp.swapaxes(o, 1, 2).reshape(C, t_q).T                # (TQ, C)

    attn = jnp.dot(o_rows, wproj[...],
                   preferred_element_type=jnp.float32) + bproj[...]
    x1 = x_t + attn                                                 # residual 1

    # ---- ln_2 + MLP ---------------------------------------------------------
    h2 = _layer_norm(x1, ln2g[...], ln2b[...]).astype(cdt)
    f = jnp.dot(h2, wfc[...], preferred_element_type=jnp.float32) + bfc[...]
    f = _gelu_tanh(f).astype(cdt)
    mlp = jnp.dot(f, wfc2[...], preferred_element_type=jnp.float32) + bfc2[...]
    out_ref[0] = (x1 + mlp).astype(out_ref.dtype)                   # residual 2


# ---------------------------------------------------------------------------
# Wrapper
# ---------------------------------------------------------------------------
def _vmem_capacity_bytes():
    try:
        return int(pltpu.get_tpu_info().vmem_capacity_bytes)
    except Exception:                       # conservative fallback
        return 64 * 2 ** 20


def _tile_bytes(shape, itemsize):
    """Rough (8,128)-padded VMEM footprint of one buffer."""
    if len(shape) == 1:
        return _pad(shape[0], 128) * itemsize
    lead = 1
    for d in shape[:-2]:
        lead *= d
    return lead * _pad(shape[-2], 8) * _pad(shape[-1], 128) * itemsize


def gpt_block(x, params, n_head, *, q_tile=128, compute_dtype=jnp.bfloat16):
    B, T, C = x.shape
    assert C % n_head == 0
    hd = C // n_head
    tq = T if T <= q_tile else q_tile
    assert T % tq == 0, "sequence length must be divisible by the q tile"
    n_q = T // tq

    cdt = jnp.dtype(compute_dtype)
    f32 = jnp.float32
    scale = 1.0 / math.sqrt(hd)

    w_attn = params["w_attn"]                        # (C, 3C), y = x @ W + b
    b_attn = params["b_attn"]                        # (1, 3C)
    # fold 1/sqrt(hd) into the Q projection (exact, zero in-kernel cost) and
    # fuse K + V into a single (C, 2C) projection.
    wq_ = w_attn[:, :C] * scale
    bq_ = b_attn[:, :C] * scale
    wkv_ = w_attn[:, C:]
    bkv_ = b_attn[:, C:]

    # matmul weights in compute dtype; LN params & biases stay f32
    args = [
        params["ln1_g"].astype(f32), params["ln1_b"].astype(f32),
        wq_.astype(cdt), bq_.astype(f32),
        wkv_.astype(cdt), bkv_.astype(f32),
        params["w_proj"].astype(cdt), params["b_proj"].astype(f32),
        params["ln2_g"].astype(f32), params["ln2_b"].astype(f32),
        params["w_fc"].astype(cdt), params["b_fc"].astype(f32),
        params["w_fc2"].astype(cdt), params["b_fc2"].astype(f32),
    ]

    # grid-invariant operands: untiled, single-buffered, resident in VMEM.
    # TODO(synk): on v7x with large C, stream w_fc/w_fc2 (8C^2 of the weight
    #             bytes) via a tiled contraction instead of keeping them here.
    const_spec = pl.BlockSpec(memory_space=pltpu.MemorySpace.VMEM)
    in_specs = [pl.BlockSpec((1, T, C), lambda b, i: (b, 0, 0))] + \
               [const_spec] * len(args)
    out_spec = pl.BlockSpec((1, tq, C), lambda b, i: (b, i, 0))

    scratch_shapes = [
        pltpu.VMEM((n_q, tq, C), cdt),               # hf   (ln_1 output cache)
        pltpu.VMEM((n_q, n_head, hd, tq), cdt),      # K cache (pre-transposed)
        pltpu.VMEM((n_q, n_head, tq, hd), cdt),      # V cache
        pltpu.VMEM((n_head, tq, 1), f32),            # m    (flash running max)
        pltpu.VMEM((n_head, tq, 1), f32),            # l    (flash running sum)
        pltpu.VMEM((n_head, tq, hd), f32),           # acc  (flash accumulator)
    ]

    # generation-aware VMEM budget (0.9x physical, never the hard 64 MiB clamp)
    est = (sum(_tile_bytes(a.shape, a.dtype.itemsize) for a in args)
           + 2 * _tile_bytes((1, T, C), 4)           # x block (double-buffered)
           + 2 * _tile_bytes((1, tq, C), 4)          # out block
           + _tile_bytes((n_q * tq, C), cdt.itemsize)
           + n_q * n_head * _tile_bytes((hd, tq), cdt.itemsize)
           + n_q * n_head * _tile_bytes((tq, hd), cdt.itemsize)
           + 2 * n_head * _tile_bytes((tq, 1), 4)
           + n_head * _tile_bytes((tq, hd), 4)
           + 4 * n_head * _tile_bytes((tq, tq), 4)   # score / p temporaries
           + 4 * _tile_bytes((tq, 4 * C), 4)         # MLP temporaries
           + 4 * _tile_bytes((tq, 2 * C), 4))        # K/V build temporaries
    cap = _vmem_capacity_bytes()
    vmem_limit = int(min(0.9 * cap, max(32 * 2 ** 20, 1.5 * est)))

    kernel = functools.partial(block_kernel, n_head, tq, cdt)
    return pl.pallas_call(
        kernel,
        out_shape=jax.ShapeDtypeStruct((B, T, C), jnp.float32),
        grid_spec=pltpu.PrefetchScalarGridSpec(
            num_scalar_prefetch=0,
            grid=(B, n_q),
            in_specs=in_specs,
            out_specs=out_spec,
            scratch_shapes=scratch_shapes),
        compiler_params=pltpu.CompilerParams(
            # TODO(synk): for B == 1 on v7x, split heads across the 2 TCs.
            dimension_semantics=("parallel", "arbitrary"),
            vmem_limit_bytes=vmem_limit),
    )(x.astype(jnp.float32), *args)


# ---------------------------------------------------------------------------
# Deterministic parameter construction (LoRA merged into effective weights)
# ---------------------------------------------------------------------------
def lora_linear_params(key, in_f, out_f, r):
    k1, k2, k3, k4 = jax.random.split(key, 4)
    w = jax.random.normal(k1, (out_f, in_f), jnp.float32) * 0.02
    b = jax.random.normal(k2, (1, out_f), jnp.float32) * 0.02
    lora_a = jax.random.normal(k3, (r, in_f), jnp.float32) * 0.02
    lora_b = jax.random.normal(k4, (out_f, r), jnp.float32) * 0.02
    scaling = 1.0 / r                              # loralib default lora_alpha=1
    w_eff = w + (lora_b @ lora_a) * scaling        # (out, in)
    return w_eff.T, b                              # transposed to (in, out)


def make_params(key, n_embd, lora_rank):
    keys = jax.random.split(key, 4)
    w_attn, b_attn = lora_linear_params(keys[0], n_embd, 3 * n_embd, lora_rank)
    w_proj, b_proj = lora_linear_params(keys[1], n_embd, n_embd, lora_rank)
    w_fc, b_fc = lora_linear_params(keys[2], n_embd, 4 * n_embd, lora_rank)
    w_fc2, b_fc2 = lora_linear_params(keys[3], 4 * n_embd, n_embd, lora_rank)
    return {"ln1_g": jnp.ones((1, n_embd), jnp.float32),
            "ln1_b": jnp.zeros((1, n_embd), jnp.float32),
            "w_attn": w_attn, "b_attn": b_attn,
            "w_proj": w_proj, "b_proj": b_proj,
            "ln2_g": jnp.ones((1, n_embd), jnp.float32),
            "ln2_b": jnp.zeros((1, n_embd), jnp.float32),
            "w_fc": w_fc, "b_fc": b_fc,
            "w_fc2": w_fc2, "b_fc2": b_fc2}


# ---------------------------------------------------------------------------
# Pure-JAX reference (mirrors the PyTorch forward)
# ---------------------------------------------------------------------------
def reference_block(x, p, n_head):
    def ln(v, g, b):
        mu = v.mean(-1, keepdims=True)
        var = ((v - mu) ** 2).mean(-1, keepdims=True)
        return (v - mu) / jnp.sqrt(var + 1e-5) * g + b

    B, T, C = x.shape
    hd = C // n_head
    h = ln(x, p["ln1_g"], p["ln1_b"])
    qkv = h @ p["w_attn"] + p["b_attn"]
    q, k, v = jnp.split(qkv, 3, axis=-1)
    q = q.reshape(B, T, n_head, hd).transpose(0, 2, 1, 3)
    k = k.reshape(B, T, n_head, hd).transpose(0, 2, 1, 3)
    v = v.reshape(B, T, n_head, hd).transpose(0, 2, 1, 3)
    att = (q @ jnp.swapaxes(k, -2, -1)) / math.sqrt(hd)
    mask = jnp.tril(jnp.ones((T, T), dtype=bool))
    att = jnp.where(mask[None, None], att, -jnp.inf)
    att = jax.nn.softmax(att, axis=-1)
    y = (att @ v).transpose(0, 2, 1, 3).reshape(B, T, C)
    x1 = x + (y @ p["w_proj"] + p["b_proj"])
    h2 = ln(x1, p["ln2_g"], p["ln2_b"])
    fc = jax.nn.gelu(h2 @ p["w_fc"] + p["b_fc"], approximate=True)
    return x1 + (fc @ p["w_fc2"] + p["b_fc2"])


# ---------------------------------------------------------------------------
if __name__ == "__main__":
    n_head, lora_rank = 4, 4
    key = jax.random.PRNGKey(0)
    kx, kp, kx2 = jax.random.split(key, 3)

    # --- small config: single q tile ---
    B, T, C = 2, 8, 32
    x = jax.random.normal(kx, (B, T, C), jnp.float32)
    params = make_params(kp, C, lora_rank)
    ref = reference_block(x, params, n_head)

    out = jax.block_until_ready(gpt_block(x, params, n_head,
                                          compute_dtype=jnp.float32))
    assert out.shape == (B, T, C)
    err = float(jnp.max(jnp.abs(out - ref)))
    assert err < 1e-3, f"f32 max err {err}"

    # --- multi-tile config: exercises chunked build, unmasked full KV tiles
    #     + masked diagonal tile ---
    B2, T2 = 2, 32
    x2 = jax.random.normal(kx2, (B2, T2, C), jnp.float32)
    ref2 = reference_block(x2, params, n_head)
    out2 = jax.block_until_ready(gpt_block(x2, params, n_head, q_tile=16,
                                           compute_dtype=jnp.float32))
    err2 = float(jnp.max(jnp.abs(out2 - ref2)))
    assert err2 < 1e-3, f"f32 tiled max err {err2}"

    # --- bf16 matmul operands, f32 accumulation (production mode) ---
    out_bf = jax.block_until_ready(gpt_block(x2, params, n_head, q_tile=16,
                                             compute_dtype=jnp.bfloat16))
    err_bf = float(jnp.max(jnp.abs(out_bf - ref2)))
    assert err_bf < 5e-2, f"bf16 max err {err_bf}"

    print("KERNEL_OK")
</pallas_src>

<mosaic_0001>
module attributes {stable_mosaic.version = 11 : i64} {
  func.func @block_kernel(%arg0: i32, %arg1: i32, %arg2: memref<1x8x32xf32, #tpu.memory_space<vmem>>, %arg3: memref<1x32xf32, #tpu.memory_space<vmem>>, %arg4: memref<1x32xf32, #tpu.memory_space<vmem>>, %arg5: memref<32x32xf32, #tpu.memory_space<vmem>>, %arg6: memref<1x32xf32, #tpu.memory_space<vmem>>, %arg7: memref<32x64xf32, #tpu.memory_space<vmem>>, %arg8: memref<1x64xf32, #tpu.memory_space<vmem>>, %arg9: memref<32x32xf32, #tpu.memory_space<vmem>>, %arg10: memref<1x32xf32, #tpu.memory_space<vmem>>, %arg11: memref<1x32xf32, #tpu.memory_space<vmem>>, %arg12: memref<1x32xf32, #tpu.memory_space<vmem>>, %arg13: memref<32x128xf32, #tpu.memory_space<vmem>>, %arg14: memref<1x128xf32, #tpu.memory_space<vmem>>, %arg15: memref<128x32xf32, #tpu.memory_space<vmem>>, %arg16: memref<1x32xf32, #tpu.memory_space<vmem>>, %arg17: memref<1x8x32xf32, #tpu.memory_space<vmem>>, %arg18: memref<1x8x32xf32, #tpu.memory_space<vmem>>, %arg19: memref<1x4x8x8xf32, #tpu.memory_space<vmem>>, %arg20: memref<1x4x8x8xf32, #tpu.memory_space<vmem>>, %arg21: memref<4x8x1xf32, #tpu.memory_space<vmem>>, %arg22: memref<4x8x1xf32, #tpu.memory_space<vmem>>, %arg23: memref<4x8x8xf32, #tpu.memory_space<vmem>>) attributes {dimension_semantics = [#tpu.dimension_semantics<parallel>, #tpu.dimension_semantics<arbitrary>], iteration_bounds = array<i64: 2, 1>, scalar_prefetch = 0 : i64, scratch_operands = 6 : i64, tpu.core_type = #tpu.core_type<tc>, window_params = [{transform_indices = @transform_0, window_bounds = array<i64: 1, 8, 32>}, {pipeline_mode = #tpu.pipeline_mode<synchronous>, transform_indices = @transform_1, window_bounds = array<i64: 1, 32>}, {pipeline_mode = #tpu.pipeline_mode<synchronous>, transform_indices = @transform_2, window_bounds = array<i64: 1, 32>}, {pipeline_mode = #tpu.pipeline_mode<synchronous>, transform_indices = @transform_3, window_bounds = array<i64: 32, 32>}, {pipeline_mode = #tpu.pipeline_mode<synchronous>, transform_indices = @transform_4, window_bounds = array<i64: 1, 32>}, {pipeline_mode = #tpu.pipeline_mode<synchronous>, transform_indices = @transform_5, window_bounds = array<i64: 32, 64>}, {pipeline_mode = #tpu.pipeline_mode<synchronous>, transform_indices = @transform_6, window_bounds = array<i64: 1, 64>}, {pipeline_mode = #tpu.pipeline_mode<synchronous>, transform_indices = @transform_7, window_bounds = array<i64: 32, 32>}, {pipeline_mode = #tpu.pipeline_mode<synchronous>, transform_indices = @transform_8, window_bounds = array<i64: 1, 32>}, {pipeline_mode = #tpu.pipeline_mode<synchronous>, transform_indices = @transform_9, window_bounds = array<i64: 1, 32>}, {pipeline_mode = #tpu.pipeline_mode<synchronous>, transform_indices = @transform_10, window_bounds = array<i64: 1, 32>}, {pipeline_mode = #tpu.pipeline_mode<synchronous>, transform_indices = @transform_11, window_bounds = array<i64: 32, 128>}, {pipeline_mode = #tpu.pipeline_mode<synchronous>, transform_indices = @transform_12, window_bounds = array<i64: 1, 128>}, {pipeline_mode = #tpu.pipeline_mode<synchronous>, transform_indices = @transform_13, window_bounds = array<i64: 128, 32>}, {pipeline_mode = #tpu.pipeline_mode<synchronous>, transform_indices = @transform_14, window_bounds = array<i64: 1, 32>}, {transform_indices = @transform_15, window_bounds = array<i64: 1, 8, 32>}]} {
    %c0_i32 = arith.constant 0 : i32
    %0 = arith.cmpi eq, %arg1, %c0_i32 : i32
    %1 = arith.extui %0 : i1 to i32
    %c0_i32_0 = arith.constant 0 : i32
    %2 = arith.cmpi ne, %1, %c0_i32_0 : i32
    scf.if %2 {
      %c0_i32_94 = arith.constant 0 : i32
      %c1_i32_95 = arith.constant 1 : i32
      %137 = arith.muli %c0_i32_94, %c1_i32_95 : i32
      %c0_i32_96 = arith.constant 0 : i32
      %138 = arith.addi %c0_i32_96, %137 : i32
      %c8_i32_97 = arith.constant 8 : i32
      %139 = arith.muli %138, %c8_i32_97 : i32
      %140 = tpu.assume_multiple %139, 8 : i32
      %c0_98 = arith.constant 0 : index
      %141 = arith.index_cast %140 : i32 to index
      %c0_99 = arith.constant 0 : index
      %142 = vector.load %arg2[%c0_98, %141, %c0_99] : memref<1x8x32xf32, #tpu.memory_space<vmem>>, vector<1x8x32xf32>
      %143 = vector.shape_cast %142 : vector<1x8x32xf32> to vector<8x32xf32>
      %c0_100 = arith.constant 0 : index
      %c0_101 = arith.constant 0 : index
      %144 = vector.load %arg3[%c0_100, %c0_101] : memref<1x32xf32, #tpu.memory_space<vmem>>, vector<1x32xf32>
      %c0_102 = arith.constant 0 : index
      %c0_103 = arith.constant 0 : index
      %145 = vector.load %arg4[%c0_102, %c0_103] : memref<1x32xf32, #tpu.memory_space<vmem>>, vector<1x32xf32>
      %cst_104 = arith.constant dense<0.000000e+00> : vector<8xf32>
      %146 = vector.multi_reduction <add>, %143, %cst_104 [1] : vector<8x32xf32> to vector<8xf32>
      %147 = vector.shape_cast %146 : vector<8xf32> to vector<8x1xf32>
      %cst_105 = arith.constant 3.200000e+01 : f32
      %148 = vector.broadcast %cst_105 : f32 to vector<8x1xf32>
      %149 = arith.divf %147, %148 : vector<8x1xf32>
      %150 = vector.broadcast %149 : vector<8x1xf32> to vector<8x32xf32>
      %151 = arith.subf %143, %150 : vector<8x32xf32>
      %152 = arith.mulf %151, %151 : vector<8x32xf32>
      %cst_106 = arith.constant dense<0.000000e+00> : vector<8xf32>
      %153 = vector.multi_reduction <add>, %152, %cst_106 [1] : vector<8x32xf32> to vector<8xf32>
      %154 = vector.shape_cast %153 : vector<8xf32> to vector<8x1xf32>
      %cst_107 = arith.constant 3.200000e+01 : f32
      %155 = vector.broadcast %cst_107 : f32 to vector<8x1xf32>
      %156 = arith.divf %154, %155 : vector<8x1xf32>
      %157 = vector.broadcast %149 : vector<8x1xf32> to vector<8x32xf32>
      %158 = arith.subf %143, %157 : vector<8x32xf32>
      %cst_108 = arith.constant 9.99999974E-6 : f32
      %159 = vector.broadcast %cst_108 : f32 to vector<8x1xf32>
      %160 = arith.addf %156, %159 : vector<8x1xf32>
      %161 = math.rsqrt %160 : vector<8x1xf32>
      %162 = vector.broadcast %161 : vector<8x1xf32> to vector<8x32xf32>
      %163 = arith.mulf %158, %162 : vector<8x32xf32>
      %164 = vector.broadcast %144 : vector<1x32xf32> to vector<8x32xf32>
      %165 = arith.mulf %163, %164 : vector<8x32xf32>
      %166 = vector.broadcast %145 : vector<1x32xf32> to vector<8x32xf32>
      %167 = arith.addf %165, %166 : vector<8x32xf32>
      %168 = arith.index_cast %138 : i32 to index
      %c0_109 = arith.constant 0 : index
      %c0_110 = arith.constant 0 : index
      %169 = vector.load %arg18[%168, %c0_109, %c0_110] : memref<1x8x32xf32, #tpu.memory_space<vmem>>, vector<1x8x32xf32>
      %170 = vector.shape_cast %169 : vector<1x8x32xf32> to vector<8x32xf32>
      %171 = vector.shape_cast %167 : vector<8x32xf32> to vector<1x8x32xf32>
      tpu.vector_store %arg18[%168, %c0_109, %c0_110], %171 {strides = array<i32>} : memref<1x8x32xf32, #tpu.memory_space<vmem>>, vector<1x8x32xf32>,
      %c0_111 = arith.constant 0 : index
      %c0_112 = arith.constant 0 : index
      %172 = vector.load %arg7[%c0_111, %c0_112] : memref<32x64xf32, #tpu.memory_space<vmem>>, vector<32x64xf32>
      %cst_113 = arith.constant dense<0.000000e+00> : vector<8x64xf32>
      %173 = tpu.matmul %167, %172, %cst_113 {dimension_numbers = #tpu.dot_dimension_numbers<[1], [0], [0], [1], [0, 0, 1, 1], [], []>} : vector<8x32xf32>, vector<32x64xf32>, vector<8x64xf32> -> vector<8x64xf32>
      %c0_114 = arith.constant 0 : index
      %c0_115 = arith.constant 0 : index
      %174 = vector.load %arg8[%c0_114, %c0_115] : memref<1x64xf32, #tpu.memory_space<vmem>>, vector<1x64xf32>
      %175 = vector.broadcast %174 : vector<1x64xf32> to vector<8x64xf32>
      %176 = arith.addf %173, %175 : vector<8x64xf32>
      %177 = vector.extract_strided_slice %176 {offsets = [0, 0], sizes = [8, 32], strides = [1, 1]} : vector<8x64xf32> to vector<8x32xf32>
      %178 = vector.extract_strided_slice %176 {offsets = [0, 32], sizes = [8, 32], strides = [1, 1]} : vector<8x64xf32> to vector<8x32xf32>
      %179 = tpu.transpose %177, [1, 0] : vector<8x32xf32> -> vector<32x8xf32>
      %180 = vector.shape_cast %179 : vector<32x8xf32> to vector<4x8x8xf32>
      %181 = arith.index_cast %138 : i32 to index
      %c0_116 = arith.constant 0 : index
      %c0_117 = arith.constant 0 : index
      %c0_118 = arith.constant 0 : index
      %182 = vector.load %arg19[%181, %c0_116, %c0_117, %c0_118] : memref<1x4x8x8xf32, #tpu.memory_space<vmem>>, vector<1x4x8x8xf32>
      %183 = vector.shape_cast %182 : vector<1x4x8x8xf32> to vector<4x8x8xf32>
      %184 = vector.shape_cast %180 : vector<4x8x8xf32> to vector<1x4x8x8xf32>
      tpu.vector_store %arg19[%181, %c0_116, %c0_117, %c0_118], %184 {strides = array<i32>} : memref<1x4x8x8xf32, #tpu.memory_space<vmem>>, vector<1x4x8x8xf32>,
      %185 = tpu.transpose %178, [1, 0] : vector<8x32xf32> -> vector<32x8xf32>
      %186 = vector.shape_cast %185 : vector<32x8xf32> to vector<4x8x8xf32>
      %187 = tpu.transpose %186, [0, 2, 1] : vector<4x8x8xf32> -> vector<4x8x8xf32>
      %188 = arith.index_cast %138 : i32 to index
      %c0_119 = arith.constant 0 : index
      %c0_120 = arith.constant 0 : index
      %c0_121 = arith.constant 0 : index
      %189 = vector.load %arg20[%188, %c0_119, %c0_120, %c0_121] : memref<1x4x8x8xf32, #tpu.memory_space<vmem>>, vector<1x4x8x8xf32>
      %190 = vector.shape_cast %189 : vector<1x4x8x8xf32> to vector<4x8x8xf32>
      %191 = vector.shape_cast %187 : vector<4x8x8xf32> to vector<1x4x8x8xf32>
      tpu.vector_store %arg20[%188, %c0_119, %c0_120, %c0_121], %191 {strides = array<i32>} : memref<1x4x8x8xf32, #tpu.memory_space<vmem>>, vector<1x4x8x8xf32>,
      %c1_i32_122 = arith.constant 1 : i32
    } else {
    }
    %c8_i32 = arith.constant 8 : i32
    %3 = arith.muli %arg1, %c8_i32 : i32
    %4 = tpu.assume_multiple %3, 8 : i32
    %c0 = arith.constant 0 : index
    %5 = arith.index_cast %4 : i32 to index
    %c0_1 = arith.constant 0 : index
    %6 = vector.load %arg2[%c0, %5, %c0_1] : memref<1x8x32xf32, #tpu.memory_space<vmem>>, vector<1x8x32xf32>
    %7 = vector.shape_cast %6 : vector<1x8x32xf32> to vector<8x32xf32>
    %8 = arith.index_cast %arg1 : i32 to index
    %c0_2 = arith.constant 0 : index
    %c0_3 = arith.constant 0 : index
    %9 = vector.load %arg18[%8, %c0_2, %c0_3] : memref<1x8x32xf32, #tpu.memory_space<vmem>>, vector<1x8x32xf32>
    %10 = vector.shape_cast %9 : vector<1x8x32xf32> to vector<8x32xf32>
    %c0_4 = arith.constant 0 : index
    %c0_5 = arith.constant 0 : index
    %11 = vector.load %arg5[%c0_4, %c0_5] : memref<32x32xf32, #tpu.memory_space<vmem>>, vector<32x32xf32>
    %cst = arith.constant dense<0.000000e+00> : vector<8x32xf32>
    %12 = tpu.matmul %10, %11, %cst {dimension_numbers = #tpu.dot_dimension_numbers<[1], [0], [0], [1], [0, 0, 1, 1], [], []>} : vector<8x32xf32>, vector<32x32xf32>, vector<8x32xf32> -> vector<8x32xf32>
    %c0_6 = arith.constant 0 : index
    %c0_7 = arith.constant 0 : index
    %13 = vector.load %arg6[%c0_6, %c0_7] : memref<1x32xf32, #tpu.memory_space<vmem>>, vector<1x32xf32>
    %14 = vector.broadcast %13 : vector<1x32xf32> to vector<8x32xf32>
    %15 = arith.addf %12, %14 : vector<8x32xf32>
    %16 = tpu.transpose %15, [1, 0] : vector<8x32xf32> -> vector<32x8xf32>
    %17 = vector.shape_cast %16 : vector<32x8xf32> to vector<4x8x8xf32>
    %18 = tpu.transpose %17, [0, 2, 1] : vector<4x8x8xf32> -> vector<4x8x8xf32>
    %cst_8 = arith.constant -1.000000e+30 : f32
    %19 = vector.broadcast %cst_8 : f32 to vector<4x8x1xf32>
    %c0_9 = arith.constant 0 : index
    %c0_10 = arith.constant 0 : index
    %c0_11 = arith.constant 0 : index
    %20 = vector.load %arg21[%c0_9, %c0_10, %c0_11] : memref<4x8x1xf32, #tpu.memory_space<vmem>>, vector<4x8x1xf32>
    tpu.vector_store %arg21[%c0_9, %c0_10, %c0_11], %19 {strides = array<i32>} : memref<4x8x1xf32, #tpu.memory_space<vmem>>, vector<4x8x1xf32>,
    %cst_12 = arith.constant 0.000000e+00 : f32
    %21 = vector.broadcast %cst_12 : f32 to vector<4x8x1xf32>
    %c0_13 = arith.constant 0 : index
    %c0_14 = arith.constant 0 : index
    %c0_15 = arith.constant 0 : index
    %22 = vector.load %arg22[%c0_13, %c0_14, %c0_15] : memref<4x8x1xf32, #tpu.memory_space<vmem>>, vector<4x8x1xf32>
    tpu.vector_store %arg22[%c0_13, %c0_14, %c0_15], %21 {strides = array<i32>} : memref<4x8x1xf32, #tpu.memory_space<vmem>>, vector<4x8x1xf32>,
    %cst_16 = arith.constant 0.000000e+00 : f32
    %23 = vector.broadcast %cst_16 : f32 to vector<4x8x8xf32>
    %c0_17 = arith.constant 0 : index
    %c0_18 = arith.constant 0 : index
    %c0_19 = arith.constant 0 : index
    %24 = vector.load %arg23[%c0_17, %c0_18, %c0_19] : memref<4x8x8xf32, #tpu.memory_space<vmem>>, vector<4x8x8xf32>
    tpu.vector_store %arg23[%c0_17, %c0_18, %c0_19], %23 {strides = array<i32>} : memref<4x8x8xf32, #tpu.memory_space<vmem>>, vector<4x8x8xf32>,
    %c0_i32_20 = arith.constant 0 : i32
    %25 = arith.subi %arg1, %c0_i32_20 : i32
    %c1_i32 = arith.constant 1 : i32
    %c1_i32_21 = arith.constant 1 : i32
    %26 = arith.subi %c1_i32, %c1_i32_21 : i32
    %27 = arith.addi %25, %26 : i32
    %c1_i32_22 = arith.constant 1 : i32
    %28 = arith.divsi %27, %c1_i32_22 : i32
    %c1_i32_23 = arith.constant 1 : i32
    %c0_i32_24 = arith.constant 0 : i32
    %c0_i32_25 = arith.constant 0 : i32
    %29 = arith.subi %28, %c0_i32_25 : i32
    %30 = arith.addi %c0_i32_25, %29 : i32
    %c1_i32_26 = arith.constant 1 : i32
    scf.for %arg24 = %c0_i32_25 to %30 step %c1_i32_26  : i32 {
      %137 = arith.muli %arg24, %c1_i32_23 : i32
      %138 = arith.addi %c0_i32_24, %137 : i32
      %139 = arith.index_cast %138 : i32 to index
      %c0_94 = arith.constant 0 : index
      %c0_95 = arith.constant 0 : index
      %c0_96 = arith.constant 0 : index
      %140 = vector.load %arg19[%139, %c0_94, %c0_95, %c0_96] : memref<1x4x8x8xf32, #tpu.memory_space<vmem>>, vector<1x4x8x8xf32>
      %141 = vector.shape_cast %140 : vector<1x4x8x8xf32> to vector<4x8x8xf32>
      %142 = arith.index_cast %138 : i32 to index
      %c0_97 = arith.constant 0 : index
      %c0_98 = arith.constant 0 : index
      %c0_99 = arith.constant 0 : index
      %143 = vector.load %arg20[%142, %c0_97, %c0_98, %c0_99] : memref<1x4x8x8xf32, #tpu.memory_space<vmem>>, vector<1x4x8x8xf32>
      %144 = vector.shape_cast %143 : vector<1x4x8x8xf32> to vector<4x8x8xf32>
      "tpu.trace_start"() <{level = 10 : i32, message = "hqd,hdk->hqk"}> : () -> ()
      %cst_100 = arith.constant dense<0.000000e+00> : vector<4x8x8xf32>
      %145 = tpu.matmul %18, %141, %cst_100 {dimension_numbers = #tpu.dot_dimension_numbers<[2], [1], [1], [2], [0, 0, 0, 1, 1, 2], [0], [0]>} : vector<4x8x8xf32>, vector<4x8x8xf32>, vector<4x8x8xf32> -> vector<4x8x8xf32>
      "tpu.trace_stop"() : () -> ()
      %c0_101 = arith.constant 0 : index
      %c0_102 = arith.constant 0 : index
      %c0_103 = arith.constant 0 : index
      %146 = vector.load %arg21[%c0_101, %c0_102, %c0_103] : memref<4x8x1xf32, #tpu.memory_space<vmem>>, vector<4x8x1xf32>
      %cst_104 = arith.constant dense<0xFF800000> : vector<4x8xf32>
      %147 = vector.multi_reduction <maximumf>, %145, %cst_104 [2] : vector<4x8x8xf32> to vector<4x8xf32>
      %148 = vector.shape_cast %147 : vector<4x8xf32> to vector<4x8x1xf32>
      %149 = arith.maximumf %146, %148 : vector<4x8x1xf32>
      %150 = arith.subf %146, %149 : vector<4x8x1xf32>
      %151 = math.exp %150 : vector<4x8x1xf32>
      %152 = vector.broadcast %149 : vector<4x8x1xf32> to vector<4x8x8xf32>
      %153 = arith.subf %145, %152 : vector<4x8x8xf32>
      %154 = math.exp %153 : vector<4x8x8xf32>
      %c0_105 = arith.constant 0 : index
      %c0_106 = arith.constant 0 : index
      %c0_107 = arith.constant 0 : index
      %155 = vector.load %arg22[%c0_105, %c0_106, %c0_107] : memref<4x8x1xf32, #tpu.memory_space<vmem>>, vector<4x8x1xf32>
      %156 = arith.mulf %151, %155 : vector<4x8x1xf32>
      %cst_108 = arith.constant dense<0.000000e+00> : vector<4x8xf32>
      %157 = vector.multi_reduction <add>, %154, %cst_108 [2] : vector<4x8x8xf32> to vector<4x8xf32>
      %158 = vector.shape_cast %157 : vector<4x8xf32> to vector<4x8x1xf32>
      %159 = arith.addf %156, %158 : vector<4x8x1xf32>
      %c0_109 = arith.constant 0 : index
      %c0_110 = arith.constant 0 : index
      %c0_111 = arith.constant 0 : index
      %160 = vector.load %arg22[%c0_109, %c0_110, %c0_111] : memref<4x8x1xf32, #tpu.memory_space<vmem>>, vector<4x8x1xf32>
      tpu.vector_store %arg22[%c0_109, %c0_110, %c0_111], %159 {strides = array<i32>} : memref<4x8x1xf32, #tpu.memory_space<vmem>>, vector<4x8x1xf32>,
      %c0_112 = arith.constant 0 : index
      %c0_113 = arith.constant 0 : index
      %c0_114 = arith.constant 0 : index
      %161 = vector.load %arg23[%c0_112, %c0_113, %c0_114] : memref<4x8x8xf32, #tpu.memory_space<vmem>>, vector<4x8x8xf32>
      %162 = vector.broadcast %151 : vector<4x8x1xf32> to vector<4x8x8xf32>
      %163 = arith.mulf %162, %161 : vector<4x8x8xf32>
      "tpu.trace_start"() <{level = 10 : i32, message = "hqk,hkd->hqd"}> : () -> ()
      %cst_115 = arith.constant dense<0.000000e+00> : vector<4x8x8xf32>
      %164 = tpu.matmul %154, %144, %cst_115 {dimension_numbers = #tpu.dot_dimension_numbers<[2], [1], [1], [2], [0, 0, 0, 1, 1, 2], [0], [0]>} : vector<4x8x8xf32>, vector<4x8x8xf32>, vector<4x8x8xf32> -> vector<4x8x8xf32>
      "tpu.trace_stop"() : () -> ()
      %165 = arith.addf %163, %164 : vector<4x8x8xf32>
      %c0_116 = arith.constant 0 : index
      %c0_117 = arith.constant 0 : index
      %c0_118 = arith.constant 0 : index
      %166 = vector.load %arg23[%c0_116, %c0_117, %c0_118] : memref<4x8x8xf32, #tpu.memory_space<vmem>>, vector<4x8x8xf32>
      tpu.vector_store %arg23[%c0_116, %c0_117, %c0_118], %165 {strides = array<i32>} : memref<4x8x8xf32, #tpu.memory_space<vmem>>, vector<4x8x8xf32>,
      %c0_119 = arith.constant 0 : index
      %c0_120 = arith.constant 0 : index
      %c0_121 = arith.constant 0 : index
      %167 = vector.load %arg21[%c0_119, %c0_120, %c0_121] : memref<4x8x1xf32, #tpu.memory_space<vmem>>, vector<4x8x1xf32>
      tpu.vector_store %arg21[%c0_119, %c0_120, %c0_121], %149 {strides = array<i32>} : memref<4x8x1xf32, #tpu.memory_space<vmem>>, vector<4x8x1xf32>,
    }
    %31 = arith.index_cast %arg1 : i32 to index
    %c0_27 = arith.constant 0 : index
    %c0_28 = arith.constant 0 : index
    %c0_29 = arith.constant 0 : index
    %32 = vector.load %arg19[%31, %c0_27, %c0_28, %c0_29] : memref<1x4x8x8xf32, #tpu.memory_space<vmem>>, vector<1x4x8x8xf32>
    %33 = vector.shape_cast %32 : vector<1x4x8x8xf32> to vector<4x8x8xf32>
    %34 = arith.index_cast %arg1 : i32 to index
    %c0_30 = arith.constant 0 : index
    %c0_31 = arith.constant 0 : index
    %c0_32 = arith.constant 0 : index
    %35 = vector.load %arg20[%34, %c0_30, %c0_31, %c0_32] : memref<1x4x8x8xf32, #tpu.memory_space<vmem>>, vector<1x4x8x8xf32>
    %36 = vector.shape_cast %35 : vector<1x4x8x8xf32> to vector<4x8x8xf32>
    "tpu.trace_start"() <{level = 10 : i32, message = "hqd,hdk->hqk"}> : () -> ()
    %cst_33 = arith.constant dense<0.000000e+00> : vector<4x8x8xf32>
    %37 = tpu.matmul %18, %33, %cst_33 {dimension_numbers = #tpu.dot_dimension_numbers<[2], [1], [1], [2], [0, 0, 0, 1, 1, 2], [0], [0]>} : vector<4x8x8xf32>, vector<4x8x8xf32>, vector<4x8x8xf32> -> vector<4x8x8xf32>
    "tpu.trace_stop"() : () -> ()
    %38 = tpu.iota {dimensions = array<i32: 0>} : vector<8x8xi32>
    %39 = tpu.iota {dimensions = array<i32: 1>} : vector<8x8xi32>
    %40 = arith.cmpi sge, %38, %39 : vector<8x8xi32>
    %41 = vector.shape_cast %40 : vector<8x8xi1> to vector<1x8x8xi1>
    %cst_34 = arith.constant -1.000000e+30 : f32
    %42 = vector.shape_cast %41 : vector<1x8x8xi1> to vector<1x8x8xi1>
    %43 = vector.broadcast %42 : vector<1x8x8xi1> to vector<4x8x8xi1>
    %44 = vector.broadcast %cst_34 : f32 to vector<4x8x8xf32>
    %45 = arith.select %43, %37, %44 : vector<4x8x8xi1>, vector<4x8x8xf32>
    %c0_35 = arith.constant 0 : index
    %c0_36 = arith.constant 0 : index
    %c0_37 = arith.constant 0 : index
    %46 = vector.load %arg21[%c0_35, %c0_36, %c0_37] : memref<4x8x1xf32, #tpu.memory_space<vmem>>, vector<4x8x1xf32>
    %cst_38 = arith.constant dense<0xFF800000> : vector<4x8xf32>
    %47 = vector.multi_reduction <maximumf>, %45, %cst_38 [2] : vector<4x8x8xf32> to vector<4x8xf32>
    %48 = vector.shape_cast %47 : vector<4x8xf32> to vector<4x8x1xf32>
    %49 = arith.maximumf %46, %48 : vector<4x8x1xf32>
    %50 = arith.subf %46, %49 : vector<4x8x1xf32>
    %51 = math.exp %50 : vector<4x8x1xf32>
    %52 = vector.broadcast %49 : vector<4x8x1xf32> to vector<4x8x8xf32>
    %53 = arith.subf %45, %52 : vector<4x8x8xf32>
    %54 = math.exp %53 : vector<4x8x8xf32>
    %c0_39 = arith.constant 0 : index
    %c0_40 = arith.constant 0 : index
    %c0_41 = arith.constant 0 : index
    %55 = vector.load %arg22[%c0_39, %c0_40, %c0_41] : memref<4x8x1xf32, #tpu.memory_space<vmem>>, vector<4x8x1xf32>
    %56 = arith.mulf %51, %55 : vector<4x8x1xf32>
    %cst_42 = arith.constant dense<0.000000e+00> : vector<4x8xf32>
    %57 = vector.multi_reduction <add>, %54, %cst_42 [2] : vector<4x8x8xf32> to vector<4x8xf32>
    %58 = vector.shape_cast %57 : vector<4x8xf32> to vector<4x8x1xf32>
    %59 = arith.addf %56, %58 : vector<4x8x1xf32>
    %c0_43 = arith.constant 0 : index
    %c0_44 = arith.constant 0 : index
    %c0_45 = arith.constant 0 : index
    %60 = vector.load %arg22[%c0_43, %c0_44, %c0_45] : memref<4x8x1xf32, #tpu.memory_space<vmem>>, vector<4x8x1xf32>
    tpu.vector_store %arg22[%c0_43, %c0_44, %c0_45], %59 {strides = array<i32>} : memref<4x8x1xf32, #tpu.memory_space<vmem>>, vector<4x8x1xf32>,
    %c0_46 = arith.constant 0 : index
    %c0_47 = arith.constant 0 : index
    %c0_48 = arith.constant 0 : index
    %61 = vector.load %arg23[%c0_46, %c0_47, %c0_48] : memref<4x8x8xf32, #tpu.memory_space<vmem>>, vector<4x8x8xf32>
    %62 = vector.broadcast %51 : vector<4x8x1xf32> to vector<4x8x8xf32>
    %63 = arith.mulf %62, %61 : vector<4x8x8xf32>
    "tpu.trace_start"() <{level = 10 : i32, message = "hqk,hkd->hqd"}> : () -> ()
    %cst_49 = arith.constant dense<0.000000e+00> : vector<4x8x8xf32>
    %64 = tpu.matmul %54, %36, %cst_49 {dimension_numbers = #tpu.dot_dimension_numbers<[2], [1], [1], [2], [0, 0, 0, 1, 1, 2], [0], [0]>} : vector<4x8x8xf32>, vector<4x8x8xf32>, vector<4x8x8xf32> -> vector<4x8x8xf32>
    "tpu.trace_stop"() : () -> ()
    %65 = arith.addf %63, %64 : vector<4x8x8xf32>
    %c0_50 = arith.constant 0 : index
    %c0_51 = arith.constant 0 : index
    %c0_52 = arith.constant 0 : index
    %66 = vector.load %arg23[%c0_50, %c0_51, %c0_52] : memref<4x8x8xf32, #tpu.memory_space<vmem>>, vector<4x8x8xf32>
    tpu.vector_store %arg23[%c0_50, %c0_51, %c0_52], %65 {strides = array<i32>} : memref<4x8x8xf32, #tpu.memory_space<vmem>>, vector<4x8x8xf32>,
    %c0_53 = arith.constant 0 : index
    %c0_54 = arith.constant 0 : index
    %c0_55 = arith.constant 0 : index
    %67 = vector.load %arg21[%c0_53, %c0_54, %c0_55] : memref<4x8x1xf32, #tpu.memory_space<vmem>>, vector<4x8x1xf32>
    tpu.vector_store %arg21[%c0_53, %c0_54, %c0_55], %49 {strides = array<i32>} : memref<4x8x1xf32, #tpu.memory_space<vmem>>, vector<4x8x1xf32>,
    %c0_56 = arith.constant 0 : index
    %c0_57 = arith.constant 0 : index
    %c0_58 = arith.constant 0 : index
    %68 = vector.load %arg22[%c0_56, %c0_57, %c0_58] : memref<4x8x1xf32, #tpu.memory_space<vmem>>, vector<4x8x1xf32>
    %69 = tpu.reciprocal %68 {approx = true} : vector<4x8x1xf32> -> vector<4x8x1xf32>
    %70 = arith.mulf %68, %69 : vector<4x8x1xf32>
    %cst_59 = arith.constant 2.000000e+00 : f32
    %71 = vector.broadcast %cst_59 : f32 to vector<4x8x1xf32>
    %72 = arith.subf %71, %70 : vector<4x8x1xf32>
    %73 = arith.mulf %69, %72 : vector<4x8x1xf32>
    %c0_60 = arith.constant 0 : index
    %c0_61 = arith.constant 0 : index
    %c0_62 = arith.constant 0 : index
    %74 = vector.load %arg23[%c0_60, %c0_61, %c0_62] : memref<4x8x8xf32, #tpu.memory_space<vmem>>, vector<4x8x8xf32>
    %75 = vector.broadcast %73 : vector<4x8x1xf32> to vector<4x8x8xf32>
    %76 = arith.mulf %74, %75 : vector<4x8x8xf32>
    %77 = tpu.transpose %76, [0, 2, 1] : vector<4x8x8xf32> -> vector<4x8x8xf32>
    %78 = vector.shape_cast %77 : vector<4x8x8xf32> to vector<32x8xf32>
    %79 = tpu.transpose %78, [1, 0] : vector<32x8xf32> -> vector<8x32xf32>
    %c0_63 = arith.constant 0 : index
    %c0_64 = arith.constant 0 : index
    %80 = vector.load %arg9[%c0_63, %c0_64] : memref<32x32xf32, #tpu.memory_space<vmem>>, vector<32x32xf32>
    %cst_65 = arith.constant dense<0.000000e+00> : vector<8x32xf32>
    %81 = tpu.matmul %79, %80, %cst_65 {dimension_numbers = #tpu.dot_dimension_numbers<[1], [0], [0], [1], [0, 0, 1, 1], [], []>} : vector<8x32xf32>, vector<32x32xf32>, vector<8x32xf32> -> vector<8x32xf32>
    %c0_66 = arith.constant 0 : index
    %c0_67 = arith.constant 0 : index
    %82 = vector.load %arg10[%c0_66, %c0_67] : memref<1x32xf32, #tpu.memory_space<vmem>>, vector<1x32xf32>
    %83 = vector.broadcast %82 : vector<1x32xf32> to vector<8x32xf32>
    %84 = arith.addf %81, %83 : vector<8x32xf32>
    %85 = arith.addf %7, %84 : vector<8x32xf32>
    %c0_68 = arith.constant 0 : index
    %c0_69 = arith.constant 0 : index
    %86 = vector.load %arg11[%c0_68, %c0_69] : memref<1x32xf32, #tpu.memory_space<vmem>>, vector<1x32xf32>
    %c0_70 = arith.constant 0 : index
    %c0_71 = arith.constant 0 : index
    %87 = vector.load %arg12[%c0_70, %c0_71] : memref<1x32xf32, #tpu.memory_space<vmem>>, vector<1x32xf32>
    %cst_72 = arith.constant dense<0.000000e+00> : vector<8xf32>
    %88 = vector.multi_reduction <add>, %85, %cst_72 [1] : vector<8x32xf32> to vector<8xf32>
    %89 = vector.shape_cast %88 : vector<8xf32> to vector<8x1xf32>
    %cst_73 = arith.constant 3.200000e+01 : f32
    %90 = vector.broadcast %cst_73 : f32 to vector<8x1xf32>
    %91 = arith.divf %89, %90 : vector<8x1xf32>
    %92 = vector.broadcast %91 : vector<8x1xf32> to vector<8x32xf32>
    %93 = arith.subf %85, %92 : vector<8x32xf32>
    %94 = arith.mulf %93, %93 : vector<8x32xf32>
    %cst_74 = arith.constant dense<0.000000e+00> : vector<8xf32>
    %95 = vector.multi_reduction <add>, %94, %cst_74 [1] : vector<8x32xf32> to vector<8xf32>
    %96 = vector.shape_cast %95 : vector<8xf32> to vector<8x1xf32>
    %cst_75 = arith.constant 3.200000e+01 : f32
    %97 = vector.broadcast %cst_75 : f32 to vector<8x1xf32>
    %98 = arith.divf %96, %97 : vector<8x1xf32>
    %99 = vector.broadcast %91 : vector<8x1xf32> to vector<8x32xf32>
    %100 = arith.subf %85, %99 : vector<8x32xf32>
    %cst_76 = arith.constant 9.99999974E-6 : f32
    %101 = vector.broadcast %cst_76 : f32 to vector<8x1xf32>
    %102 = arith.addf %98, %101 : vector<8x1xf32>
    %103 = math.rsqrt %102 : vector<8x1xf32>
    %104 = vector.broadcast %103 : vector<8x1xf32> to vector<8x32xf32>
    %105 = arith.mulf %100, %104 : vector<8x32xf32>
    %106 = vector.broadcast %86 : vector<1x32xf32> to vector<8x32xf32>
    %107 = arith.mulf %105, %106 : vector<8x32xf32>
    %108 = vector.broadcast %87 : vector<1x32xf32> to vector<8x32xf32>
    %109 = arith.addf %107, %108 : vector<8x32xf32>
    %c0_77 = arith.constant 0 : index
    %c0_78 = arith.constant 0 : index
    %110 = vector.load %arg13[%c0_77, %c0_78] : memref<32x128xf32, #tpu.memory_space<vmem>>, vector<32x128xf32>
    %cst_79 = arith.constant dense<0.000000e+00> : vector<8x128xf32>
    %111 = tpu.matmul %109, %110, %cst_79 {dimension_numbers = #tpu.dot_dimension_numbers<[1], [0], [0], [1], [0, 0, 1, 1], [], []>} : vector<8x32xf32>, vector<32x128xf32>, vector<8x128xf32> -> vector<8x128xf32>
    %c0_80 = arith.constant 0 : index
    %c0_81 = arith.constant 0 : index
    %112 = vector.load %arg14[%c0_80, %c0_81] : memref<1x128xf32, #tpu.memory_space<vmem>>, vector<1x128xf32>
    %113 = vector.broadcast %112 : vector<1x128xf32> to vector<8x128xf32>
    %114 = arith.addf %111, %113 : vector<8x128xf32>
    %cst_82 = arith.constant 5.000000e-01 : f32
    %115 = vector.broadcast %cst_82 : f32 to vector<8x128xf32>
    %116 = arith.mulf %115, %114 : vector<8x128xf32>
    %cst_83 = arith.constant 4.471500e-02 : f32
    %117 = vector.broadcast %cst_83 : f32 to vector<8x128xf32>
    %118 = arith.mulf %117, %114 : vector<8x128xf32>
    %119 = arith.mulf %118, %114 : vector<8x128xf32>
    %120 = arith.mulf %119, %114 : vector<8x128xf32>
    %121 = arith.addf %114, %120 : vector<8x128xf32>
    %cst_84 = arith.constant 0.797884583 : f32
    %122 = vector.broadcast %cst_84 : f32 to vector<8x128xf32>
    %123 = arith.mulf %122, %121 : vector<8x128xf32>
    %124 = math.tanh %123 : vector<8x128xf32>
    %cst_85 = arith.constant 1.000000e+00 : f32
    %125 = vector.broadcast %cst_85 : f32 to vector<8x128xf32>
    %126 = arith.addf %125, %124 : vector<8x128xf32>
    %127 = arith.mulf %116, %126 : vector<8x128xf32>
    %c0_86 = arith.constant 0 : index
    %c0_87 = arith.constant 0 : index
    %128 = vector.load %arg15[%c0_86, %c0_87] : memref<128x32xf32, #tpu.memory_space<vmem>>, vector<128x32xf32>
    %cst_88 = arith.constant dense<0.000000e+00> : vector<8x32xf32>
    %129 = tpu.matmul %127, %128, %cst_88 {dimension_numbers = #tpu.dot_dimension_numbers<[1], [0], [0], [1], [0, 0, 1, 1], [], []>} : vector<8x128xf32>, vector<128x32xf32>, vector<8x32xf32> -> vector<8x32xf32>
    %c0_89 = arith.constant 0 : index
    %c0_90 = arith.constant 0 : index
    %130 = vector.load %arg16[%c0_89, %c0_90] : memref<1x32xf32, #tpu.memory_space<vmem>>, vector<1x32xf32>
    %131 = vector.broadcast %130 : vector<1x32xf32> to vector<8x32xf32>
    %132 = arith.addf %129, %131 : vector<8x32xf32>
    %133 = arith.addf %85, %132 : vector<8x32xf32>
    %c0_91 = arith.constant 0 : index
    %c0_92 = arith.constant 0 : index
    %c0_93 = arith.constant 0 : index
    %134 = vector.load %arg17[%c0_91, %c0_92, %c0_93] : memref<1x8x32xf32, #tpu.memory_space<vmem>>, vector<1x8x32xf32>
    %135 = vector.shape_cast %134 : vector<1x8x32xf32> to vector<8x32xf32>
    %136 = vector.shape_cast %133 : vector<8x32xf32> to vector<1x8x32xf32>
    tpu.vector_store %arg17[%c0_91, %c0_92, %c0_93], %136 {strides = array<i32>} : memref<1x8x32xf32, #tpu.memory_space<vmem>>, vector<1x8x32xf32>,
    return
  }
  func.func @transform_0(%arg0: i32, %arg1: i32) -> (i32, i32, i32) {
    %c0_i32 = arith.constant 0 : i32
    %c0_i32_0 = arith.constant 0 : i32
    %c0_i32_1 = arith.constant 0 : i32
    return %arg0, %c0_i32, %c0_i32_0 : i32, i32, i32
  }
  func.func @transform_1(%arg0: i32, %arg1: i32) -> (i32, i32) {
    %c0_i32 = arith.constant 0 : i32
    %c0_i32_0 = arith.constant 0 : i32
    %c0_i32_1 = arith.constant 0 : i32
    return %c0_i32, %c0_i32_0 : i32, i32
  }
  func.func @transform_2(%arg0: i32, %arg1: i32) -> (i32, i32) {
    %c0_i32 = arith.constant 0 : i32
    %c0_i32_0 = arith.constant 0 : i32
    %c0_i32_1 = arith.constant 0 : i32
    return %c0_i32, %c0_i32_0 : i32, i32
  }
  func.func @transform_3(%arg0: i32, %arg1: i32) -> (i32, i32) {
    %c0_i32 = arith.constant 0 : i32
    %c0_i32_0 = arith.constant 0 : i32
    %c0_i32_1 = arith.constant 0 : i32
    return %c0_i32, %c0_i32_0 : i32, i32
  }
  func.func @transform_4(%arg0: i32, %arg1: i32) -> (i32, i32) {
    %c0_i32 = arith.constant 0 : i32
    %c0_i32_0 = arith.constant 0 : i32
    %c0_i32_1 = arith.constant 0 : i32
    return %c0_i32, %c0_i32_0 : i32, i32
  }
  func.func @transform_5(%arg0: i32, %arg1: i32) -> (i32, i32) {
    %c0_i32 = arith.constant 0 : i32
    %c0_i32_0 = arith.constant 0 : i32
    %c0_i32_1 = arith.constant 0 : i32
    return %c0_i32, %c0_i32_0 : i32, i32
  }
  func.func @transform_6(%arg0: i32, %arg1: i32) -> (i32, i32) {
    %c0_i32 = arith.constant 0 : i32
    %c0_i32_0 = arith.constant 0 : i32
    %c0_i32_1 = arith.constant 0 : i32
    return %c0_i32, %c0_i32_0 : i32, i32
  }
  func.func @transform_7(%arg0: i32, %arg1: i32) -> (i32, i32) {
    %c0_i32 = arith.constant 0 : i32
    %c0_i32_0 = arith.constant 0 : i32
    %c0_i32_1 = arith.constant 0 : i32
    return %c0_i32, %c0_i32_0 : i32, i32
  }
  func.func @transform_8(%arg0: i32, %arg1: i32) -> (i32, i32) {
    %c0_i32 = arith.constant 0 : i32
    %c0_i32_0 = arith.constant 0 : i32
    %c0_i32_1 = arith.constant 0 : i32
    return %c0_i32, %c0_i32_0 : i32, i32
  }
  func.func @transform_9(%arg0: i32, %arg1: i32) -> (i32, i32) {
    %c0_i32 = arith.constant 0 : i32
    %c0_i32_0 = arith.constant 0 : i32
    %c0_i32_1 = arith.constant 0 : i32
    return %c0_i32, %c0_i32_0 : i32, i32
  }
  func.func @transform_10(%arg0: i32, %arg1: i32) -> (i32, i32) {
    %c0_i32 = arith.constant 0 : i32
    %c0_i32_0 = arith.constant 0 : i32
    %c0_i32_1 = arith.constant 0 : i32
    return %c0_i32, %c0_i32_0 : i32, i32
  }
  func.func @transform_11(%arg0: i32, %arg1: i32) -> (i32, i32) {
    %c0_i32 = arith.constant 0 : i32
    %c0_i32_0 = arith.constant 0 : i32
    %c0_i32_1 = arith.constant 0 : i32
    return %c0_i32, %c0_i32_0 : i32, i32
  }
  func.func @transform_12(%arg0: i32, %arg1: i32) -> (i32, i32) {
    %c0_i32 = arith.constant 0 : i32
    %c0_i32_0 = arith.constant 0 : i32
    %c0_i32_1 = arith.constant 0 : i32
    return %c0_i32, %c0_i32_0 : i32, i32
  }
  func.func @transform_13(%arg0: i32, %arg1: i32) -> (i32, i32) {
    %c0_i32 = arith.constant 0 : i32
    %c0_i32_0 = arith.constant 0 : i32
    %c0_i32_1 = arith.constant 0 : i32
    return %c0_i32, %c0_i32_0 : i32, i32
  }
  func.func @transform_14(%arg0: i32, %arg1: i32) -> (i32, i32) {
    %c0_i32 = arith.constant 0 : i32
    %c0_i32_0 = arith.constant 0 : i32
    %c0_i32_1 = arith.constant 0 : i32
    return %c0_i32, %c0_i32_0 : i32, i32
  }
  func.func @transform_15(%arg0: i32, %arg1: i32) -> (i32, i32, i32) {
    %c0_i32 = arith.constant 0 : i32
    %c0_i32_0 = arith.constant 0 : i32
    return %arg0, %arg1, %c0_i32 : i32, i32, i32
  }
}

</mosaic_0001>

<llo_original>
// kernel: tpu_custom_call.1
$region0: #{tpu_custom_call.1}
  #allocation0 [shape = 'u32[]', space=smem, size = 0x4, offset = 0x4, fixed_abs, tag = 'smem constant byte address 0x4 - core index']
  #allocation1 [shape = 'u32[72,128]{1,0:T(1,128)}', space=vmem, size = 0x9000, scoped, tag = 'internal scratch']
  #allocation2 [shape = 'f32[1,8,32]{2,1,0:T(8,128)}', space=vmem, size = 0x1000, scoped, tag = 'scratch operand']
  #allocation3 [shape = 'f32[1,4,8,8]{3,2,1,0:T(8,128)}', space=vmem, size = 0x4000, scoped, tag = 'scratch operand']
  #allocation4 [shape = 'f32[1,4,8,8]{3,2,1,0:T(8,128)}', space=vmem, size = 0x4000, scoped, tag = 'scratch operand']
  #allocation5 [shape = 'f32[4,8,1]{2,1,0:T(8,128)}', space=vmem, size = 0x4000, scoped, tag = 'scratch operand']
  #allocation6 [shape = 'f32[4,8,1]{2,1,0:T(8,128)}', space=vmem, size = 0x4000, scoped, tag = 'scratch operand']
  #allocation7 [shape = 'f32[4,8,8]{2,1,0:T(8,128)}', space=vmem, size = 0x4000, scoped, tag = 'scratch operand']
  %s0 = inlined_call_operand.vmem [shape: f32[2,8,32], index: 0, kind: input, shape index: {}]
  %s1 = inlined_call_operand.vmem [shape: f32[1,32], index: 1, kind: input, shape index: {}]
  %s2 = inlined_call_operand.vmem [shape: f32[1,32], index: 2, kind: input, shape index: {}]
  %s3 = inlined_call_operand.vmem [shape: f32[32,32], index: 3, kind: input, shape index: {}]
  %s4 = inlined_call_operand.vmem [shape: f32[1,32], index: 4, kind: input, shape index: {}]
  %s5 = inlined_call_operand.vmem [shape: f32[32,64], index: 5, kind: input, shape index: {}]
  %s6 = inlined_call_operand.vmem [shape: f32[1,64], index: 6, kind: input, shape index: {}]
  %s7 = inlined_call_operand.vmem [shape: f32[32,32], index: 7, kind: input, shape index: {}]
  %s8 = inlined_call_operand.vmem [shape: f32[1,32], index: 8, kind: input, shape index: {}]
  %s9 = inlined_call_operand.vmem [shape: f32[1,32], index: 9, kind: input, shape index: {}]
  %s10 = inlined_call_operand.vmem [shape: f32[1,32], index: 10, kind: input, shape index: {}]
  %s11 = inlined_call_operand.vmem [shape: f32[32,128], index: 11, kind: input, shape index: {}]
  %s12 = inlined_call_operand.vmem [shape: f32[1,128], index: 12, kind: input, shape index: {}]
  %s13 = inlined_call_operand.vmem [shape: f32[128,32], index: 13, kind: input, shape index: {}]
  %s14 = inlined_call_operand.vmem [shape: f32[1,32], index: 14, kind: input, shape index: {}]
  %s15 = inlined_call_operand.hbm [shape: f32[2,8,32], index: 15, kind: output, shape index: {}]
  %s16 = sld [smem:[#allocation0]]
  $region104: #{tpu_custom_call.1} parent=0
    _
  %s18 = ssub.s32 1, %s16
  %s19 = scalar_select 0, %s18, %s16
  $region1: #{tpu_custom_call.1} parent=0
    #allocation8 [shape = 'u8[8192]{0}', space=vmem, size = 0x2000, scoped, tag = 'output window, operand 0']
    #allocation9 [shape = 's32[2]{0}', space=sflag, size = 0x8, scoped, tag = 'scoped memory for tpu_custom_call.1']
    %20 = vsyncpa [#allocation9], 0
    %s21 = scalar_lea.sflag [#allocation9], 1
    %22 = vsyncpa %s21, 0
    loop: start=0, step=1, limit=4
    $region2: #{tpu_custom_call.1} parent=1 // loop_pre_header
      _
    $region3: #{tpu_custom_call.1} parent=1 // loop_header
      %s24 = sphi 0, %s28
      %p25 = scmp.ge.s32.totalorder %s24, 4
      %s31 = sphi 0, %s43
      %s32 = sphi 0, %s39
      %s33 = sphi 0, %s31
      %s34 = sphi 0, %s32
      %s35 = sphi 0, %s33
      %s36 = sphi 0, %s34
      %s46 = sphi 0, %s48
      %s49 = sphi 0, %s46
      %s50 = sphi 0, %s49
      %s66 = sphi 0, %s50
      %s70 = sphi 0, %s70
      %s72 = sphi 0, %s70
      %s73 = sphi 0, %s72
      %s87 = sphi 0, %s73
      %s91 = sphi 0, %s91
      %s93 = sphi 0, %s91
      %s94 = sphi 0, %s93
      %s108 = sphi 0, %s94
      %s112 = sphi 0, %s112
      %s114 = sphi 0, %s112
      %s115 = sphi 0, %s114
      %s129 = sphi 0, %s115
      %s133 = sphi 0, %s133
      %s135 = sphi 0, %s133
      %s136 = sphi 0, %s135
      %s150 = sphi 0, %s136
      %s154 = sphi 0, %s154
      %s156 = sphi 0, %s154
      %s157 = sphi 0, %s156
      %s171 = sphi 0, %s157
      %s175 = sphi 0, %s175
      %s177 = sphi 0, %s175
      %s178 = sphi 0, %s177
      %s192 = sphi 0, %s178
      %s196 = sphi 0, %s196
      %s198 = sphi 0, %s196
      %s199 = sphi 0, %s198
      %s213 = sphi 0, %s199
      %s217 = sphi 0, %s217
      %s219 = sphi 0, %s217
      %s220 = sphi 0, %s219
      %s234 = sphi 0, %s220
      %s238 = sphi 0, %s238
      %s240 = sphi 0, %s238
      %s241 = sphi 0, %s240
      %s255 = sphi 0, %s241
      %s259 = sphi 0, %s259
      %s261 = sphi 0, %s259
      %s262 = sphi 0, %s261
      %s276 = sphi 0, %s262
      %s280 = sphi 0, %s280
      %s282 = sphi 0, %s280
      %s283 = sphi 0, %s282
      %s297 = sphi 0, %s283
      %s301 = sphi 0, %s301
      %s303 = sphi 0, %s301
      %s304 = sphi 0, %s303
      %s318 = sphi 0, %s304
      %s322 = sphi 0, %s322
      %s324 = sphi 0, %s322
      %s325 = sphi 0, %s324
      %s339 = sphi 0, %s325
      %s343 = sphi 0, %s343
      %s345 = sphi 0, %s343
      %s346 = sphi 0, %s345
      %s360 = sphi 0, %s346
      %s368 = sphi 0, %s370
      %s371 = sphi 0, %s368
      %s372 = sphi 0, %s371
      %s388 = sphi 0, %s372
    $region4: #{tpu_custom_call.1} parent=1 // loop_header_branch
      %27 = sbr.rel (%p25) target = $region8
    $region5: #{tpu_custom_call.1} parent=1 // loop_body
      %s29 = ssub.s32 %s24, 1
      %s30 = ssub.s32 %s24, 2
      %s37 = sadd.s32 1, %s32
      %p38 = scmp.ge.s32.totalorder %s37, 1
      %s39 = scalar_select %p38, 0, %s37
      %s40 = sadd.s32 1, %s31
      %s41 = scalar_select %p38, %s40, %s31
      %p42 = scmp.ge.s32.totalorder %s41, 2
      %s43 = scalar_select %p42, 0, %s41
      %s44 = ssub.s32 %s31, %s43
      %p45 = scmp.eq.s32.totalorder %s44, 0
      %s47 = sadd.s32 %s46, 1
      %s48 = scalar_select %p45, %s46, %s47
      %p51 = pneg %p45
      %p52 = scmp.eq.s32.totalorder %s24, 1
      %p53 = por %p51, %p52
      %p54 = scmp.ne.s32.totalorder %s46, %s49
      %p55 = scmp.eq.s32.totalorder %s24, 0
      %p56 = por %p54, %p55
      %p57 = scmp.ne.s32.totalorder %s46, %s49
      %p58 = scmp.eq.s32.totalorder %s29, 1
      %p59 = por %p57, %p58
      %p60 = scmp.ne.s32.totalorder %s49, %s50
      %p61 = scmp.eq.s32.totalorder %s29, 0
      %p62 = por %p60, %p61
      %p63 = scmp.ne.s32.totalorder %s49, %s50
      %p64 = scmp.eq.s32.totalorder %s30, 1
      %p65 = por %p63, %p64
      %p67 = scmp.ne.s32.totalorder %s50, %s66
      %p68 = scmp.eq.s32.totalorder %s30, 0
      %p69 = por %p67, %p68
      %s71 = sadd.s32 %s70, 1
      %p74 = scmp.eq.s32.totalorder %s24, 1
      %p75 = scmp.ne.s32.totalorder %s70, %s72
      %p76 = scmp.eq.s32.totalorder %s24, 0
      %p77 = por %p75, %p76
      %p78 = scmp.ne.s32.totalorder %s70, %s72
      %p79 = scmp.eq.s32.totalorder %s29, 1
      %p80 = por %p78, %p79
      %p81 = scmp.ne.s32.totalorder %s72, %s73
      %p82 = scmp.eq.s32.totalorder %s29, 0
      %p83 = por %p81, %p82
      %p84 = scmp.ne.s32.totalorder %s72, %s73
      %p85 = scmp.eq.s32.totalorder %s30, 1
      %p86 = por %p84, %p85
      %p88 = scmp.ne.s32.totalorder %s73, %s87
      %p89 = scmp.eq.s32.totalorder %s30, 0
      %p90 = por %p88, %p89
      %s92 = sadd.s32 %s91, 1
      %p95 = scmp.eq.s32.totalorder %s24, 1
      %p96 = scmp.ne.s32.totalorder %s91, %s93
      %p97 = scmp.eq.s32.totalorder %s24, 0
      %p98 = por %p96, %p97
      %p99 = scmp.ne.s32.totalorder %s91, %s93
      %p100 = scmp.eq.s32.totalorder %s29, 1
      %p101 = por %p99, %p100
      %p102 = scmp.ne.s32.totalorder %s93, %s94
      %p103 = scmp.eq.s32.totalorder %s29, 0
      %p104 = por %p102, %p103
      %p105 = scmp.ne.s32.totalorder %s93, %s94
      %p106 = scmp.eq.s32.totalorder %s30, 1
      %p107 = por %p105, %p106
      %p109 = scmp.ne.s32.totalorder %s94, %s108
      %p110 = scmp.eq.s32.totalorder %s30, 0
      %p111 = por %p109, %p110
      %s113 = sadd.s32 %s112, 1
      %p116 = scmp.eq.s32.totalorder %s24, 1
      %p117 = scmp.ne.s32.totalorder %s112, %s114
      %p118 = scmp.eq.s32.totalorder %s24, 0
      %p119 = por %p117, %p118
      %p120 = scmp.ne.s32.totalorder %s112, %s114
      %p121 = scmp.eq.s32.totalorder %s29, 1
      %p122 = por %p120, %p121
      %p123 = scmp.ne.s32.totalorder %s114, %s115
      %p124 = scmp.eq.s32.totalorder %s29, 0
      %p125 = por %p123, %p124
      %p126 = scmp.ne.s32.totalorder %s114, %s115
      %p127 = scmp.eq.s32.totalorder %s30, 1
      %p128 = por %p126, %p127
      %p130 = scmp.ne.s32.totalorder %s115, %s129
      %p131 = scmp.eq.s32.totalorder %s30, 0
      %p132 = por %p130, %p131
      %s134 = sadd.s32 %s133, 1
      %p137 = scmp.eq.s32.totalorder %s24, 1
      %p138 = scmp.ne.s32.totalorder %s133, %s135
      %p139 = scmp.eq.s32.totalorder %s24, 0
      %p140 = por %p138, %p139
      %p141 = scmp.ne.s32.totalorder %s133, %s135
      %p142 = scmp.eq.s32.totalorder %s29, 1
      %p143 = por %p141, %p142
      %p144 = scmp.ne.s32.totalorder %s135, %s136
      %p145 = scmp.eq.s32.totalorder %s29, 0
      %p146 = por %p144, %p145
      %p147 = scmp.ne.s32.totalorder %s135, %s136
      %p148 = scmp.eq.s32.totalorder %s30, 1
      %p149 = por %p147, %p148
      %p151 = scmp.ne.s32.totalorder %s136, %s150
      %p152 = scmp.eq.s32.totalorder %s30, 0
      %p153 = por %p151, %p152
      %s155 = sadd.s32 %s154, 1
      %p158 = scmp.eq.s32.totalorder %s24, 1
      %p159 = scmp.ne.s32.totalorder %s154, %s156
      %p160 = scmp.eq.s32.totalorder %s24, 0
      %p161 = por %p159, %p160
      %p162 = scmp.ne.s32.totalorder %s154, %s156
      %p163 = scmp.eq.s32.totalorder %s29, 1
      %p164 = por %p162, %p163
      %p165 = scmp.ne.s32.totalorder %s156, %s157
      %p166 = scmp.eq.s32.totalorder %s29, 0
      %p167 = por %p165, %p166
      %p168 = scmp.ne.s32.totalorder %s156, %s157
      %p169 = scmp.eq.s32.totalorder %s30, 1
      %p170 = por %p168, %p169
      %p172 = scmp.ne.s32.totalorder %s157, %s171
      %p173 = scmp.eq.s32.totalorder %s30, 0
      %p174 = por %p172, %p173
      %s176 = sadd.s32 %s175, 1
      %p179 = scmp.eq.s32.totalorder %s24, 1
      %p180 = scmp.ne.s32.totalorder %s175, %s177
      %p181 = scmp.eq.s32.totalorder %s24, 0
      %p182 = por %p180, %p181
      %p183 = scmp.ne.s32.totalorder %s175, %s177
      %p184 = scmp.eq.s32.totalorder %s29, 1
      %p185 = por %p183, %p184
      %p186 = scmp.ne.s32.totalorder %s177, %s178
      %p187 = scmp.eq.s32.totalorder %s29, 0
      %p188 = por %p186, %p187
      %p189 = scmp.ne.s32.totalorder %s177, %s178
      %p190 = scmp.eq.s32.totalorder %s30, 1
      %p191 = por %p189, %p190
      %p193 = scmp.ne.s32.totalorder %s178, %s192
      %p194 = scmp.eq.s32.totalorder %s30, 0
      %p195 = por %p193, %p194
      %s197 = sadd.s32 %s196, 1
      %p200 = scmp.eq.s32.totalorder %s24, 1
      %p201 = scmp.ne.s32.totalorder %s196, %s198
      %p202 = scmp.eq.s32.totalorder %s24, 0
      %p203 = por %p201, %p202
      %p204 = scmp.ne.s32.totalorder %s196, %s198
      %p205 = scmp.eq.s32.totalorder %s29, 1
      %p206 = por %p204, %p205
      %p207 = scmp.ne.s32.totalorder %s198, %s199
      %p208 = scmp.eq.s32.totalorder %s29, 0
      %p209 = por %p207, %p208
      %p210 = scmp.ne.s32.totalorder %s198, %s199
      %p211 = scmp.eq.s32.totalorder %s30, 1
      %p212 = por %p210, %p211
      %p214 = scmp.ne.s32.totalorder %s199, %s213
      %p215 = scmp.eq.s32.totalorder %s30, 0
      %p216 = por %p214, %p215
      %s218 = sadd.s32 %s217, 1
      %p221 = scmp.eq.s32.totalorder %s24, 1
      %p222 = scmp.ne.s32.totalorder %s217, %s219
      %p223 = scmp.eq.s32.totalorder %s24, 0
      %p224 = por %p222, %p223
      %p225 = scmp.ne.s32.totalorder %s217, %s219
      %p226 = scmp.eq.s32.totalorder %s29, 1
      %p227 = por %p225, %p226
      %p228 = scmp.ne.s32.totalorder %s219, %s220
      %p229 = scmp.eq.s32.totalorder %s29, 0
      %p230 = por %p228, %p229
      %p231 = scmp.ne.s32.totalorder %s219, %s220
      %p232 = scmp.eq.s32.totalorder %s30, 1
      %p233 = por %p231, %p232
      %p235 = scmp.ne.s32.totalorder %s220, %s234
      %p236 = scmp.eq.s32.totalorder %s30, 0
      %p237 = por %p235, %p236
      %s239 = sadd.s32 %s238, 1
      %p242 = scmp.eq.s32.totalorder %s24, 1
      %p243 = scmp.ne.s32.totalorder %s238, %s240
      %p244 = scmp.eq.s32.totalorder %s24, 0
      %p245 = por %p243, %p244
      %p246 = scmp.ne.s32.totalorder %s238, %s240
      %p247 = scmp.eq.s32.totalorder %s29, 1
      %p248 = por %p246, %p247
      %p249 = scmp.ne.s32.totalorder %s240, %s241
      %p250 = scmp.eq.s32.totalorder %s29, 0
      %p251 = por %p249, %p250
      %p252 = scmp.ne.s32.totalorder %s240, %s241
      %p253 = scmp.eq.s32.totalorder %s30, 1
      %p254 = por %p252, %p253
      %p256 = scmp.ne.s32.totalorder %s241, %s255
      %p257 = scmp.eq.s32.totalorder %s30, 0
      %p258 = por %p256, %p257
      %s260 = sadd.s32 %s259, 1
      %p263 = scmp.eq.s32.totalorder %s24, 1
      %p264 = scmp.ne.s32.totalorder %s259, %s261
      %p265 = scmp.eq.s32.totalorder %s24, 0
      %p266 = por %p264, %p265
      %p267 = scmp.ne.s32.totalorder %s259, %s261
      %p268 = scmp.eq.s32.totalorder %s29, 1
      %p269 = por %p267, %p268
      %p270 = scmp.ne.s32.totalorder %s261, %s262
      %p271 = scmp.eq.s32.totalorder %s29, 0
      %p272 = por %p270, %p271
      %p273 = scmp.ne.s32.totalorder %s261, %s262
      %p274 = scmp.eq.s32.totalorder %s30, 1
      %p275 = por %p273, %p274
      %p277 = scmp.ne.s32.totalorder %s262, %s276
      %p278 = scmp.eq.s32.totalorder %s30, 0
      %p279 = por %p277, %p278
      %s281 = sadd.s32 %s280, 1
      %p284 = scmp.eq.s32.totalorder %s24, 1
      %p285 = scmp.ne.s32.totalorder %s280, %s282
      %p286 = scmp.eq.s32.totalorder %s24, 0
      %p287 = por %p285, %p286
      %p288 = scmp.ne.s32.totalorder %s280, %s282
      %p289 = scmp.eq.s32.totalorder %s29, 1
      %p290 = por %p288, %p289
      %p291 = scmp.ne.s32.totalorder %s282, %s283
      %p292 = scmp.eq.s32.totalorder %s29, 0
      %p293 = por %p291, %p292
      %p294 = scmp.ne.s32.totalorder %s282, %s283
      %p295 = scmp.eq.s32.totalorder %s30, 1
      %p296 = por %p294, %p295
      %p298 = scmp.ne.s32.totalorder %s283, %s297
      %p299 = scmp.eq.s32.totalorder %s30, 0
      %p300 = por %p298, %p299
      %s302 = sadd.s32 %s301, 1
      %p305 = scmp.eq.s32.totalorder %s24, 1
      %p306 = scmp.ne.s32.totalorder %s301, %s303
      %p307 = scmp.eq.s32.totalorder %s24, 0
      %p308 = por %p306, %p307
      %p309 = scmp.ne.s32.totalorder %s301, %s303
      %p310 = scmp.eq.s32.totalorder %s29, 1
      %p311 = por %p309, %p310
      %p312 = scmp.ne.s32.totalorder %s303, %s304
      %p313 = scmp.eq.s32.totalorder %s29, 0
      %p314 = por %p312, %p313
      %p315 = scmp.ne.s32.totalorder %s303, %s304
      %p316 = scmp.eq.s32.totalorder %s30, 1
      %p317 = por %p315, %p316
      %p319 = scmp.ne.s32.totalorder %s304, %s318
      %p320 = scmp.eq.s32.totalorder %s30, 0
      %p321 = por %p319, %p320
      %s323 = sadd.s32 %s322, 1
      %p326 = scmp.eq.s32.totalorder %s24, 1
      %p327 = scmp.ne.s32.totalorder %s322, %s324
      %p328 = scmp.eq.s32.totalorder %s24, 0
      %p329 = por %p327, %p328
      %p330 = scmp.ne.s32.totalorder %s322, %s324
      %p331 = scmp.eq.s32.totalorder %s29, 1
      %p332 = por %p330, %p331
      %p333 = scmp.ne.s32.totalorder %s324, %s325
      %p334 = scmp.eq.s32.totalorder %s29, 0
      %p335 = por %p333, %p334
      %p336 = scmp.ne.s32.totalorder %s324, %s325
      %p337 = scmp.eq.s32.totalorder %s30, 1
      %p338 = por %p336, %p337
      %p340 = scmp.ne.s32.totalorder %s325, %s339
      %p341 = scmp.eq.s32.totalorder %s30, 0
      %p342 = por %p340, %p341
      %s344 = sadd.s32 %s343, 1
      %p347 = scmp.eq.s32.totalorder %s24, 1
      %p348 = scmp.ne.s32.totalorder %s343, %s345
      %p349 = scmp.eq.s32.totalorder %s24, 0
      %p350 = por %p348, %p349
      %p351 = scmp.ne.s32.totalorder %s343, %s345
      %p352 = scmp.eq.s32.totalorder %s29, 1
      %p353 = por %p351, %p352
      %p354 = scmp.ne.s32.totalorder %s345, %s346
      %p355 = scmp.eq.s32.totalorder %s29, 0
      %p356 = por %p354, %p355
      %p357 = scmp.ne.s32.totalorder %s345, %s346
      %p358 = scmp.eq.s32.totalorder %s30, 1
      %p359 = por %p357, %p358
      %p361 = scmp.ne.s32.totalorder %s346, %s360
      %p362 = scmp.eq.s32.totalorder %s30, 0
      %p363 = por %p361, %p362
      %s364 = ssub.s32 %s31, %s43
      %s365 = ssub.s32 %s32, %s39
      %s366 = sor.u32 %s364, %s365
      %p367 = scmp.eq.s32.totalorder %s366, 0
      %s369 = sadd.s32 %s368, 1
      %s370 = scalar_select %p367, %s368, %s369
      %p373 = pneg %p367
      %p374 = scmp.eq.s32.totalorder %s24, 1
      %p375 = por %p373, %p374
      %p376 = scmp.ne.s32.totalorder %s368, %s371
      %p377 = scmp.eq.s32.totalorder %s24, 0
      %p378 = por %p376, %p377
      %p379 = scmp.ne.s32.totalorder %s368, %s371
      %p380 = scmp.eq.s32.totalorder %s29, 1
      %p381 = por %p379, %p380
      %p382 = scmp.ne.s32.totalorder %s371, %s372
      %p383 = scmp.eq.s32.totalorder %s29, 0
      %p384 = por %p382, %p383
      %p385 = scmp.ne.s32.totalorder %s371, %s372
      %p386 = scmp.eq.s32.totalorder %s30, 1
      %p387 = por %p385, %p386
      %p389 = scmp.ne.s32.totalorder %s372, %s388
      %p390 = scmp.eq.s32.totalorder %s30, 0
      %p391 = por %p389, %p390
      %p392 = scmp.le.s32.totalorder 1, %s24
      %p393 = scmp.lt.s32.totalorder %s24, 3
      %p394 = pnand %p392, %p393
      %p395 = pneg %p394
      // Predicated region
      $region9: #{tpu_custom_call.1} parent=5 // pred_check
        _
      $region10: #{tpu_custom_call.1} parent=5 // pred_check_branch
        %397 = sbr.rel (%p394) target = $region12
      $region11: #{tpu_custom_call.1} parent=5 // pred_region
        %s398 = ssub.s32 %s24, 1
        // Predicated region
        $region13: #{tpu_custom_call.1} parent=11 // pred_check
          %p399 = pneg %p83
        $region14: #{tpu_custom_call.1} parent=11 // pred_check_branch
          %401 = sbr.rel (%p399) target = $region16
        $region15: #{tpu_custom_call.1} parent=11 // pred_region
          _
        $region16: #{tpu_custom_call.1} parent=11 // pred_fallthru
          _
        // Predicated region
        $region17: #{tpu_custom_call.1} parent=11 // pred_check
          %p402 = pneg %p104
        $region18: #{tpu_custom_call.1} parent=11 // pred_check_branch
          %404 = sbr.rel (%p402) target = $region20
        $region19: #{tpu_custom_call.1} parent=11 // pred_region
          _
        $region20: #{tpu_custom_call.1} parent=11 // pred_fallthru
          _
        // Predicated region
        $region21: #{tpu_custom_call.1} parent=11 // pred_check
          %p405 = pneg %p125
        $region22: #{tpu_custom_call.1} parent=11 // pred_check_branch
          %407 = sbr.rel (%p405) target = $region24
        $region23: #{tpu_custom_call.1} parent=11 // pred_region
          _
        $region24: #{tpu_custom_call.1} parent=11 // pred_fallthru
          _
        // Predicated region
        $region25: #{tpu_custom_call.1} parent=11 // pred_check
          %p408 = pneg %p146
        $region26: #{tpu_custom_call.1} parent=11 // pred_check_branch
          %410 = sbr.rel (%p408) target = $region28
        $region27: #{tpu_custom_call.1} parent=11 // pred_region
          _
        $region28: #{tpu_custom_call.1} parent=11 // pred_fallthru
          _
        // Predicated region
        $region29: #{tpu_custom_call.1} parent=11 // pred_check
          %p411 = pneg %p167
        $region30: #{tpu_custom_call.1} parent=11 // pred_check_branch
          %413 = sbr.rel (%p411) target = $region32
        $region31: #{tpu_custom_call.1} parent=11 // pred_region
          _
        $region32: #{tpu_custom_call.1} parent=11 // pred_fallthru
          _
        // Predicated region
        $region33: #{tpu_custom_call.1} parent=11 // pred_check
          %p414 = pneg %p188
        $region34: #{tpu_custom_call.1} parent=11 // pred_check_branch
          %416 = sbr.rel (%p414) target = $region36
        $region35: #{tpu_custom_call.1} parent=11 // pred_region
          _
        $region36: #{tpu_custom_call.1} parent=11 // pred_fallthru
          _
        // Predicated region
        $region37: #{tpu_custom_call.1} parent=11 // pred_check
          %p417 = pneg %p209
        $region38: #{tpu_custom_call.1} parent=11 // pred_check_branch
          %419 = sbr.rel (%p417) target = $region40
        $region39: #{tpu_custom_call.1} parent=11 // pred_region
          _
        $region40: #{tpu_custom_call.1} parent=11 // pred_fallthru
          _
        // Predicated region
        $region41: #{tpu_custom_call.1} parent=11 // pred_check
          %p420 = pneg %p230
        $region42: #{tpu_custom_call.1} parent=11 // pred_check_branch
          %422 = sbr.rel (%p420) target = $region44
        $region43: #{tpu_custom_call.1} parent=11 // pred_region
          _
        $region44: #{tpu_custom_call.1} parent=11 // pred_fallthru
          _
        // Predicated region
        $region45: #{tpu_custom_call.1} parent=11 // pred_check
          %p423 = pneg %p251
        $region46: #{tpu_custom_call.1} parent=11 // pred_check_branch
          %425 = sbr.rel (%p423) target = $region48
        $region47: #{tpu_custom_call.1} parent=11 // pred_region
          _
        $region48: #{tpu_custom_call.1} parent=11 // pred_fallthru
          _
        // Predicated region
        $region49: #{tpu_custom_call.1} parent=11 // pred_check
          %p426 = pneg %p272
        $region50: #{tpu_custom_call.1} parent=11 // pred_check_branch
          %428 = sbr.rel (%p426) target = $region52
        $region51: #{tpu_custom_call.1} parent=11 // pred_region
          _
        $region52: #{tpu_custom_call.1} parent=11 // pred_fallthru
          _
        // Predicated region
        $region53: #{tpu_custom_call.1} parent=11 // pred_check
          %p429 = pneg %p293
        $region54: #{tpu_custom_call.1} parent=11 // pred_check_branch
          %431 = sbr.rel (%p429) target = $region56
        $region55: #{tpu_custom_call.1} parent=11 // pred_region
          _
        $region56: #{tpu_custom_call.1} parent=11 // pred_fallthru
          _
        // Predicated region
        $region57: #{tpu_custom_call.1} parent=11 // pred_check
          %p432 = pneg %p314
        $region58: #{tpu_custom_call.1} parent=11 // pred_check_branch
          %434 = sbr.rel (%p432) target = $region60
        $region59: #{tpu_custom_call.1} parent=11 // pred_region
          _
        $region60: #{tpu_custom_call.1} parent=11 // pred_fallthru
          _
        // Predicated region
        $region61: #{tpu_custom_call.1} parent=11 // pred_check
          %p435 = pneg %p335
        $region62: #{tpu_custom_call.1} parent=11 // pred_check_branch
          %437 = sbr.rel (%p435) target = $region64
        $region63: #{tpu_custom_call.1} parent=11 // pred_region
          _
        $region64: #{tpu_custom_call.1} parent=11 // pred_fallthru
          _
        // Predicated region
        $region65: #{tpu_custom_call.1} parent=11 // pred_check
          %p438 = pneg %p356
        $region66: #{tpu_custom_call.1} parent=11 // pred_check_branch
          %440 = sbr.rel (%p438) target = $region68
        $region67: #{tpu_custom_call.1} parent=11 // pred_region
          _
        $region68: #{tpu_custom_call.1} parent=11 // pred_fallthru
          _
      $region12: #{tpu_custom_call.1} parent=5 // pred_fallthru
        _
      %p441 = scmp.lt.s32.totalorder %s24, 2
      // Predicated region
      $region69: #{tpu_custom_call.1} parent=5 // pred_check
        %p442 = pneg %p441
      $region70: #{tpu_custom_call.1} parent=5 // pred_check_branch
        %444 = sbr.rel (%p442) target = $region72
      $region71: #{tpu_custom_call.1} parent=5 // pred_region
        // Predicated region
        $region73: #{tpu_custom_call.1} parent=71 // pred_check
          %p445 = pneg %p56
        $region74: #{tpu_custom_call.1} parent=71 // pred_check_branch
          %447 = sbr.rel (%p445) target = $region76
        $region75: #{tpu_custom_call.1} parent=71 // pred_region
          %p448 = scmp.lt.s32.totalorder %s31, 1
          %s449 = scalar_select %p448, %s31, 1
          %s450 = smul.addr %s449, 8
          %s451 = scalar_lea.vmem %s0, %s450
        $region76: #{tpu_custom_call.1} parent=71 // pred_fallthru
          _
      $region72: #{tpu_custom_call.1} parent=5 // pred_fallthru
        _
      %p452 = scmp.le.s32.totalorder 1, %s24
      %p453 = scmp.lt.s32.totalorder %s24, 3
      %p454 = pnand %p452, %p453
      %p455 = pneg %p454
      // Predicated region
      $region77: #{tpu_custom_call.1} parent=5 // pred_check
        _
      $region78: #{tpu_custom_call.1} parent=5 // pred_check_branch
        %457 = sbr.rel (%p454) target = $region80
      $region79: #{tpu_custom_call.1} parent=5 // pred_region
        %s458 = ssub.s32 %s24, 1
        %p459 = scmp.lt.s32.totalorder %s33, 1
        %s460 = scalar_select %p459, %s33, 1
        %s461 = smul.addr %s460, 8
        %s462 = scalar_lea.vmem %s0, %s461
        %p463 = pneg %p62
        %p464 = pneg %p59
        %p465 = pneg %p83
        %p466 = pneg %p80
        %p467 = pneg %p104
        %p468 = pneg %p101
        %p469 = pneg %p125
        %p470 = pneg %p122
        %p471 = pneg %p146
        %p472 = pneg %p143
        %p473 = pneg %p167
        %p474 = pneg %p164
        %p475 = pneg %p188
        %p476 = pneg %p185
        %p477 = pneg %p209
        %p478 = pneg %p206
        %p479 = pneg %p230
        %p480 = pneg %p227
        %p481 = pneg %p251
        %p482 = pneg %p248
        %p483 = pneg %p272
        %p484 = pneg %p269
        %p485 = pneg %p293
        %p486 = pneg %p290
        %p487 = pneg %p314
        %p488 = pneg %p311
        %p489 = pneg %p335
        %p490 = pneg %p332
        %p491 = pneg %p356
        %p492 = pneg %p353
        %p493 = pneg %p384
        %p494 = pneg %p381
        %s495 = sand.u32 %s371, 1
        %s496 = scalar_lea.sflag [#allocation9], %s495
        %s497 = sand.u32 %s371, 1
        %s498 = smul.addr %s497, 8
        %s499 = scalar_lea.vmem [#allocation8], %s498
        %p500 = scmp.lt.s32.totalorder %s33, 1
        %s501 = scalar_select %p500, %s33, 1
        %s502 = smul.addr %s501, 8
        %s503 = scalar_lea.vmem %s0, %s502
        %p504 = scmp.eq.s32.totalorder %s34, 0
        // Predicated region
        $region81: #{tpu_custom_call.1} parent=79 // pred_check
          %p505 = pneg %p504
        $region82: #{tpu_custom_call.1} parent=79 // pred_check_branch
          %507 = sbr.rel (%p505) target = $region84
        $region83: #{tpu_custom_call.1} parent=79 // pred_region
          %v508 = vld [vmem:[%s503] sm:$0xff]
          %v509 = vld [vmem:[%s1] sm:$0x1]
          %v510 = vld [vmem:[%s2] sm:$0x1]
          %vm511 = vcmask 261120
          %v512 = vsel %vm511, %v508, 0.0
          %513 = vadd.xlane.f32.xlu0 %v512
          %v514 = vpop.xlane.xlu0 %513
          %v515 = vrcp.pop 32.0
          %v516 = vmul.f32 32.0, %v515
          %v517 = vsub.f32 1.0, %v516
          %v518 = vmul.f32 %v515, %v517
          %v519 = vadd.f32 %v515, %v518
          %vm520 = vweird.f32 %v515
          %v521 = vsel %vm520, %v515, %v519
          %v522 = vmul.f32 %v514, %v521
          %v523 = vsub.f32 %v508, %v522
          %v524 = vmul.f32 %v523, %v523
          %v525 = vsel %vm511, %v524, 0.0
          %526 = vadd.xlane.f32.xlu0 %v525
          %v527 = vpop.xlane.xlu0 %526
          %v528 = vmul.f32 %v527, %v521
          %v529 = vadd.f32 %v528, 1e-05
          %v530 = vrsqrt.pop %v529
          %v531 = vmul.f32 %v530, %v529
          %v532 = vmul.f32 %v531, %v530
          %v533 = vmul.f32 0.5, %v532
          %v534 = vsub.f32 1.5, %v533
          %v535 = vmul.f32 %v530, %v534
          %vm536 = vweird.f32 %v529
          %vm537 = vweird.f32 %v530
          %vm538 = vmor %vm536, %vm537
          %v539 = vsel %vm538, %v530, %v535
          %v540 = vmul.f32 %v523, %v539
          %v542 = vperm.slane %v509, 0
          %v544 = vmul.f32 %v540, %v542
          %v546 = vperm.slane %v510, 0
          %v548 = vadd.f32 %v544, %v546
          %549 = vst.msk [vmem:[#allocation2] sm:$0xff] %vm511, %v548
          %v550 = vld [vmem:[%s5] sm:$0xff]
          %v551 = vld [vmem:[%s5 + $0x8] sm:$0xff]
          %v552 = vld [vmem:[%s5 + $0x10] sm:$0xff]
          %v553 = vld [vmem:[%s5 + $0x18] sm:$0xff]
          %v554 = vld [vmem:[%s6] sm:$0x1]
          %v556 = vperm.slane %v554, 0
          %v559 = vsel %vm511, %v548, 0
          %561 = vmatpush.msra.mxu0 0.0
          %562 = vmatpush.msra.mxu0 0.0
          %563 = vmatpush.msra.mxu0 0.0
          %564 = vmatpush.msra.mxu0 0.0
          %565 = vmatpush.msra.mxu0 0.0
          %566 = vmatpush.msra.mxu0 0.0
          %567 = vmatpush.msra.mxu0 0.0
          %568 = vmatpush.msra.mxu0 0.0
          %569 = vmatpush.msra.mxu0 0.0
          %570 = vmatpush.msra.mxu0 0.0
          %571 = vmatpush.msra.mxu0 0.0
          %572 = vmatpush.msra.mxu0 0.0
          %573 = vmatpush.msra.mxu0 %v553
          %574 = vmatpush.msra.mxu0 %v552
          %575 = vmatpush.msra.mxu0 %v551
          %576 = vmatpush.msra.mxu0 %v550
          %577 = vmatmul.f32.gmra.mxu0 %v559
          %v578 = vpop.f32.mrf.mxu0
          %v579 = vadd.f32 %v556, %v578
          %580 = vdwg.mxu0
          %581 = vxpose.xlu0.b32.start [1/16] %v579, 128
          %582 = vxpose.xlu0.b32.cont [2/16] 0.0, 128
          %583 = vxpose.xlu0.b32.cont [3/16] 0.0, 128
          %584 = vxpose.xlu0.b32.cont [4/16] 0.0, 128
          %585 = vxpose.xlu0.b32.cont [5/16] 0.0, 128
          %586 = vxpose.xlu0.b32.cont [6/16] 0.0, 128
          %587 = vxpose.xlu0.b32.cont [7/16] 0.0, 128
          %588 = vxpose.xlu0.b32.cont [8/16] 0.0, 128
          %589 = vxpose.xlu0.b32.cont [9/16] 0.0, 128
          %590 = vxpose.xlu0.b32.cont [10/16] 0.0, 128
          %591 = vxpose.xlu0.b32.cont [11/16] 0.0, 128
          %592 = vxpose.xlu0.b32.cont [12/16] 0.0, 128
          %593 = vxpose.xlu0.b32.cont [13/16] 0.0, 128
          %594 = vxpose.xlu0.b32.cont [14/16] 0.0, 128
          %595 = vxpose.xlu0.b32.cont [15/16] 0.0, 128
          %596 = vxpose.xlu0.b32.end [16/16] 0.0, 128
          %v597 = vpop.trf.xlu0
          %v598 = vpop.trf.xlu0
          %v599 = vpop.trf.xlu0
          %v600 = vpop.trf.xlu0
          %v601 = vpop.trf.xlu0
          %v602 = vpop.trf.xlu0
          %v603 = vpop.trf.xlu0
          %v604 = vpop.trf.xlu0
          %v605 = vpop.trf.xlu0
          %v606 = vpop.trf.xlu0
          %v607 = vpop.trf.xlu0
          %v608 = vpop.trf.xlu0
          %v609 = vpop.trf.xlu0
          %v610 = vpop.trf.xlu0
          %v611 = vpop.trf.xlu0
          %v612 = vpop.trf.xlu0
          %vm613 = vcmask 64512
          %614 = vst.msk [vmem:[#allocation3] sm:$0xff] %vm613, %v597
          %615 = vst.msk [vmem:[#allocation3 + $0x8] sm:$0xff] %vm613, %v598
          %616 = vst.msk [vmem:[#allocation3 + $0x10] sm:$0xff] %vm613, %v599
          %617 = vst.msk [vmem:[#allocation3 + $0x18] sm:$0xff] %vm613, %v600
          %619 = vrot.lane.b32.xlu0 %v579, 96
          %v620 = vpop.permute.xlu0 %619
          %622 = vxpose.xlu0.b32.start [1/16] %v620, 128
          %623 = vxpose.xlu0.b32.cont [2/16] 0.0, 128
          %624 = vxpose.xlu0.b32.cont [3/16] 0.0, 128
          %625 = vxpose.xlu0.b32.cont [4/16] 0.0, 128
          %626 = vxpose.xlu0.b32.cont [5/16] 0.0, 128
          %627 = vxpose.xlu0.b32.cont [6/16] 0.0, 128
          %628 = vxpose.xlu0.b32.cont [7/16] 0.0, 128
          %629 = vxpose.xlu0.b32.cont [8/16] 0.0, 128
          %630 = vxpose.xlu0.b32.cont [9/16] 0.0, 128
          %631 = vxpose.xlu0.b32.cont [10/16] 0.0, 128
          %632 = vxpose.xlu0.b32.cont [11/16] 0.0, 128
          %633 = vxpose.xlu0.b32.cont [12/16] 0.0, 128
          %634 = vxpose.xlu0.b32.cont [13/16] 0.0, 128
          %635 = vxpose.xlu0.b32.cont [14/16] 0.0, 128
          %636 = vxpose.xlu0.b32.cont [15/16] 0.0, 128
          %637 = vxpose.xlu0.b32.end [16/16] 0.0, 128
          %v638 = vpop.trf.xlu0
          %v639 = vpop.trf.xlu0
          %v640 = vpop.trf.xlu0
          %v641 = vpop.trf.xlu0
          %v642 = vpop.trf.xlu0
          %v643 = vpop.trf.xlu0
          %v644 = vpop.trf.xlu0
          %v645 = vpop.trf.xlu0
          %v646 = vpop.trf.xlu0
          %v647 = vpop.trf.xlu0
          %v648 = vpop.trf.xlu0
          %v649 = vpop.trf.xlu0
          %v650 = vpop.trf.xlu0
          %v651 = vpop.trf.xlu0
          %v652 = vpop.trf.xlu0
          %v653 = vpop.trf.xlu0
          %654 = vxpose.xlu0.b32.start [1/16] %v638, 128
          %655 = vxpose.xlu0.b32.cont [2/16] 0.0, 128
          %656 = vxpose.xlu0.b32.cont [3/16] 0.0, 128
          %657 = vxpose.xlu0.b32.cont [4/16] 0.0, 128
          %658 = vxpose.xlu0.b32.cont [5/16] 0.0, 128
          %659 = vxpose.xlu0.b32.cont [6/16] 0.0, 128
          %660 = vxpose.xlu0.b32.cont [7/16] 0.0, 128
          %661 = vxpose.xlu0.b32.cont [8/16] 0.0, 128
          %662 = vxpose.xlu0.b32.cont [9/16] 0.0, 128
          %663 = vxpose.xlu0.b32.cont [10/16] 0.0, 128
          %664 = vxpose.xlu0.b32.cont [11/16] 0.0, 128
          %665 = vxpose.xlu0.b32.cont [12/16] 0.0, 128
          %666 = vxpose.xlu0.b32.cont [13/16] 0.0, 128
          %667 = vxpose.xlu0.b32.cont [14/16] 0.0, 128
          %668 = vxpose.xlu0.b32.cont [15/16] 0.0, 128
          %669 = vxpose.xlu0.b32.end [16/16] 0.0, 128
          %v670 = vpop.trf.xlu0
          %v671 = vpop.trf.xlu0
          %v672 = vpop.trf.xlu0
          %v673 = vpop.trf.xlu0
          %v674 = vpop.trf.xlu0
          %v675 = vpop.trf.xlu0
          %v676 = vpop.trf.xlu0
          %v677 = vpop.trf.xlu0
          %v678 = vpop.trf.xlu0
          %v679 = vpop.trf.xlu0
          %v680 = vpop.trf.xlu0
          %v681 = vpop.trf.xlu0
          %v682 = vpop.trf.xlu0
          %v683 = vpop.trf.xlu0
          %v684 = vpop.trf.xlu0
          %v685 = vpop.trf.xlu0
          %686 = vxpose.xlu0.b32.start [1/16] %v639, 128
          %687 = vxpose.xlu0.b32.cont [2/16] 0.0, 128
          %688 = vxpose.xlu0.b32.cont [3/16] 0.0, 128
          %689 = vxpose.xlu0.b32.cont [4/16] 0.0, 128
          %690 = vxpose.xlu0.b32.cont [5/16] 0.0, 128
          %691 = vxpose.xlu0.b32.cont [6/16] 0.0, 128
          %692 = vxpose.xlu0.b32.cont [7/16] 0.0, 128
          %693 = vxpose.xlu0.b32.cont [8/16] 0.0, 128
          %694 = vxpose.xlu0.b32.cont [9/16] 0.0, 128
          %695 = vxpose.xlu0.b32.cont [10/16] 0.0, 128
          %696 = vxpose.xlu0.b32.cont [11/16] 0.0, 128
          %697 = vxpose.xlu0.b32.cont [12/16] 0.0, 128
          %698 = vxpose.xlu0.b32.cont [13/16] 0.0, 128
          %699 = vxpose.xlu0.b32.cont [14/16] 0.0, 128
          %700 = vxpose.xlu0.b32.cont [15/16] 0.0, 128
          %701 = vxpose.xlu0.b32.end [16/16] 0.0, 128
          %v702 = vpop.trf.xlu0
          %v703 = vpop.trf.xlu0
          %v704 = vpop.trf.xlu0
          %v705 = vpop.trf.xlu0
          %v706 = vpop.trf.xlu0
          %v707 = vpop.trf.xlu0
          %v708 = vpop.trf.xlu0
          %v709 = vpop.trf.xlu0
          %v710 = vpop.trf.xlu0
          %v711 = vpop.trf.xlu0
          %v712 = vpop.trf.xlu0
          %v713 = vpop.trf.xlu0
          %v714 = vpop.trf.xlu0
          %v715 = vpop.trf.xlu0
          %v716 = vpop.trf.xlu0
          %v717 = vpop.trf.xlu0
          %718 = vxpose.xlu0.b32.start [1/16] %v640, 128
          %719 = vxpose.xlu0.b32.cont [2/16] 0.0, 128
          %720 = vxpose.xlu0.b32.cont [3/16] 0.0, 128
          %721 = vxpose.xlu0.b32.cont [4/16] 0.0, 128
          %722 = vxpose.xlu0.b32.cont [5/16] 0.0, 128
          %723 = vxpose.xlu0.b32.cont [6/16] 0.0, 128
          %724 = vxpose.xlu0.b32.cont [7/16] 0.0, 128
          %725 = vxpose.xlu0.b32.cont [8/16] 0.0, 128
          %726 = vxpose.xlu0.b32.cont [9/16] 0.0, 128
          %727 = vxpose.xlu0.b32.cont [10/16] 0.0, 128
          %728 = vxpose.xlu0.b32.cont [11/16] 0.0, 128
          %729 = vxpose.xlu0.b32.cont [12/16] 0.0, 128
          %730 = vxpose.xlu0.b32.cont [13/16] 0.0, 128
          %731 = vxpose.xlu0.b32.cont [14/16] 0.0, 128
          %732 = vxpose.xlu0.b32.cont [15/16] 0.0, 128
          %733 = vxpose.xlu0.b32.end [16/16] 0.0, 128
          %v734 = vpop.trf.xlu0
          %v735 = vpop.trf.xlu0
          %v736 = vpop.trf.xlu0
          %v737 = vpop.trf.xlu0
          %v738 = vpop.trf.xlu0
          %v739 = vpop.trf.xlu0
          %v740 = vpop.trf.xlu0
          %v741 = vpop.trf.xlu0
          %v742 = vpop.trf.xlu0
          %v743 = vpop.trf.xlu0
          %v744 = vpop.trf.xlu0
          %v745 = vpop.trf.xlu0
          %v746 = vpop.trf.xlu0
          %v747 = vpop.trf.xlu0
          %v748 = vpop.trf.xlu0
          %v749 = vpop.trf.xlu0
          %750 = vxpose.xlu0.b32.start [1/16] %v641, 128
          %751 = vxpose.xlu0.b32.cont [2/16] 0.0, 128
          %752 = vxpose.xlu0.b32.cont [3/16] 0.0, 128
          %753 = vxpose.xlu0.b32.cont [4/16] 0.0, 128
          %754 = vxpose.xlu0.b32.cont [5/16] 0.0, 128
          %755 = vxpose.xlu0.b32.cont [6/16] 0.0, 128
          %756 = vxpose.xlu0.b32.cont [7/16] 0.0, 128
          %757 = vxpose.xlu0.b32.cont [8/16] 0.0, 128
          %758 = vxpose.xlu0.b32.cont [9/16] 0.0, 128
          %759 = vxpose.xlu0.b32.cont [10/16] 0.0, 128
          %760 = vxpose.xlu0.b32.cont [11/16] 0.0, 128
          %761 = vxpose.xlu0.b32.cont [12/16] 0.0, 128
          %762 = vxpose.xlu0.b32.cont [13/16] 0.0, 128
          %763 = vxpose.xlu0.b32.cont [14/16] 0.0, 128
          %764 = vxpose.xlu0.b32.cont [15/16] 0.0, 128
          %765 = vxpose.xlu0.b32.end [16/16] 0.0, 128
          %v766 = vpop.trf.xlu0
          %v767 = vpop.trf.xlu0
          %v768 = vpop.trf.xlu0
          %v769 = vpop.trf.xlu0
          %v770 = vpop.trf.xlu0
          %v771 = vpop.trf.xlu0
          %v772 = vpop.trf.xlu0
          %v773 = vpop.trf.xlu0
          %v774 = vpop.trf.xlu0
          %v775 = vpop.trf.xlu0
          %v776 = vpop.trf.xlu0
          %v777 = vpop.trf.xlu0
          %v778 = vpop.trf.xlu0
          %v779 = vpop.trf.xlu0
          %v780 = vpop.trf.xlu0
          %v781 = vpop.trf.xlu0
          %782 = vst.msk [vmem:[#allocation4] sm:$0xff] %vm613, %v670
          %783 = vst.msk [vmem:[#allocation4 + $0x8] sm:$0xff] %vm613, %v702
          %784 = vst.msk [vmem:[#allocation4 + $0x10] sm:$0xff] %vm613, %v734
          %785 = vst.msk [vmem:[#allocation4 + $0x18] sm:$0xff] %vm613, %v766
        $region84: #{tpu_custom_call.1} parent=79 // pred_fallthru
          _
        %s786 = smul.u32 %s34, 8
        %s787 = scalar_lea.vmem %s503, %s786
        %v788 = vld [vmem:[%s787] sm:$0xff]
        %s789 = scalar_lea.vmem [#allocation2], %s786
        %v790 = vld [vmem:[%s789] sm:$0xff]
        %v791 = vld [vmem:[%s3] sm:$0xff]
        %v792 = vld [vmem:[%s3 + $0x8] sm:$0xff]
        %v793 = vld [vmem:[%s3 + $0x10] sm:$0xff]
        %v794 = vld [vmem:[%s3 + $0x18] sm:$0xff]
        %v795 = vld [vmem:[%s4] sm:$0x1]
        %v797 = vperm.slane %v795, 0
        %vm799 = vcmask 261120
        %v801 = vsel %vm799, %v790, 0
        %803 = vmatpush.msra.mxu0 0.0
        %804 = vmatpush.msra.mxu0 0.0
        %805 = vmatpush.msra.mxu0 0.0
        %806 = vmatpush.msra.mxu0 0.0
        %807 = vmatpush.msra.mxu0 0.0
        %808 = vmatpush.msra.mxu0 0.0
        %809 = vmatpush.msra.mxu0 0.0
        %810 = vmatpush.msra.mxu0 0.0
        %811 = vmatpush.msra.mxu0 0.0
        %812 = vmatpush.msra.mxu0 0.0
        %813 = vmatpush.msra.mxu0 0.0
        %814 = vmatpush.msra.mxu0 0.0
        %815 = vmatpush.msra.mxu0 %v794
        %816 = vmatpush.msra.mxu0 %v793
        %817 = vmatpush.msra.mxu0 %v792
        %818 = vmatpush.msra.mxu0 %v791
        %819 = vmatmul.f32.gmra.mxu0 %v801
        %v820 = vpop.f32.mrf.mxu0
        %v821 = vadd.f32 %v797, %v820
        %822 = vdwg.mxu0
        %823 = vxpose.xlu0.b32.start [1/16] %v821, 128
        %824 = vxpose.xlu0.b32.cont [2/16] 0.0, 128
        %825 = vxpose.xlu0.b32.cont [3/16] 0.0, 128
        %826 = vxpose.xlu0.b32.cont [4/16] 0.0, 128
        %827 = vxpose.xlu0.b32.cont [5/16] 0.0, 128
        %828 = vxpose.xlu0.b32.cont [6/16] 0.0, 128
        %829 = vxpose.xlu0.b32.cont [7/16] 0.0, 128
        %830 = vxpose.xlu0.b32.cont [8/16] 0.0, 128
        %831 = vxpose.xlu0.b32.cont [9/16] 0.0, 128
        %832 = vxpose.xlu0.b32.cont [10/16] 0.0, 128
        %833 = vxpose.xlu0.b32.cont [11/16] 0.0, 128
        %834 = vxpose.xlu0.b32.cont [12/16] 0.0, 128
        %835 = vxpose.xlu0.b32.cont [13/16] 0.0, 128
        %836 = vxpose.xlu0.b32.cont [14/16] 0.0, 128
        %837 = vxpose.xlu0.b32.cont [15/16] 0.0, 128
        %838 = vxpose.xlu0.b32.end [16/16] 0.0, 128
        %v839 = vpop.trf.xlu0
        %v840 = vpop.trf.xlu0
        %v841 = vpop.trf.xlu0
        %v842 = vpop.trf.xlu0
        %v843 = vpop.trf.xlu0
        %v844 = vpop.trf.xlu0
        %v845 = vpop.trf.xlu0
        %v846 = vpop.trf.xlu0
        %v847 = vpop.trf.xlu0
        %v848 = vpop.trf.xlu0
        %v849 = vpop.trf.xlu0
        %v850 = vpop.trf.xlu0
        %v851 = vpop.trf.xlu0
        %v852 = vpop.trf.xlu0
        %v853 = vpop.trf.xlu0
        %v854 = vpop.trf.xlu0
        %855 = vxpose.xlu0.b32.start [1/16] %v839, 128
        %856 = vxpose.xlu0.b32.cont [2/16] 0.0, 128
        %857 = vxpose.xlu0.b32.cont [3/16] 0.0, 128
        %858 = vxpose.xlu0.b32.cont [4/16] 0.0, 128
        %859 = vxpose.xlu0.b32.cont [5/16] 0.0, 128
        %860 = vxpose.xlu0.b32.cont [6/16] 0.0, 128
        %861 = vxpose.xlu0.b32.cont [7/16] 0.0, 128
        %862 = vxpose.xlu0.b32.cont [8/16] 0.0, 128
        %863 = vxpose.xlu0.b32.cont [9/16] 0.0, 128
        %864 = vxpose.xlu0.b32.cont [10/16] 0.0, 128
        %865 = vxpose.xlu0.b32.cont [11/16] 0.0, 128
        %866 = vxpose.xlu0.b32.cont [12/16] 0.0, 128
        %867 = vxpose.xlu0.b32.cont [13/16] 0.0, 128
        %868 = vxpose.xlu0.b32.cont [14/16] 0.0, 128
        %869 = vxpose.xlu0.b32.cont [15/16] 0.0, 128
        %870 = vxpose.xlu0.b32.end [16/16] 0.0, 128
        %v871 = vpop.trf.xlu0
        %v872 = vpop.trf.xlu0
        %v873 = vpop.trf.xlu0
        %v874 = vpop.trf.xlu0
        %v875 = vpop.trf.xlu0
        %v876 = vpop.trf.xlu0
        %v877 = vpop.trf.xlu0
        %v878 = vpop.trf.xlu0
        %v879 = vpop.trf.xlu0
        %v880 = vpop.trf.xlu0
        %v881 = vpop.trf.xlu0
        %v882 = vpop.trf.xlu0
        %v883 = vpop.trf.xlu0
        %v884 = vpop.trf.xlu0
        %v885 = vpop.trf.xlu0
        %v886 = vpop.trf.xlu0
        %887 = vxpose.xlu0.b32.start [1/16] %v840, 128
        %888 = vxpose.xlu0.b32.cont [2/16] 0.0, 128
        %889 = vxpose.xlu0.b32.cont [3/16] 0.0, 128
        %890 = vxpose.xlu0.b32.cont [4/16] 0.0, 128
        %891 = vxpose.xlu0.b32.cont [5/16] 0.0, 128
        %892 = vxpose.xlu0.b32.cont [6/16] 0.0, 128
        %893 = vxpose.xlu0.b32.cont [7/16] 0.0, 128
        %894 = vxpose.xlu0.b32.cont [8/16] 0.0, 128
        %895 = vxpose.xlu0.b32.cont [9/16] 0.0, 128
        %896 = vxpose.xlu0.b32.cont [10/16] 0.0, 128
        %897 = vxpose.xlu0.b32.cont [11/16] 0.0, 128
        %898 = vxpose.xlu0.b32.cont [12/16] 0.0, 128
        %899 = vxpose.xlu0.b32.cont [13/16] 0.0, 128
        %900 = vxpose.xlu0.b32.cont [14/16] 0.0, 128
        %901 = vxpose.xlu0.b32.cont [15/16] 0.0, 128
        %902 = vxpose.xlu0.b32.end [16/16] 0.0, 128
        %v903 = vpop.trf.xlu0
        %v904 = vpop.trf.xlu0
        %v905 = vpop.trf.xlu0
        %v906 = vpop.trf.xlu0
        %v907 = vpop.trf.xlu0
        %v908 = vpop.trf.xlu0
        %v909 = vpop.trf.xlu0
        %v910 = vpop.trf.xlu0
        %v911 = vpop.trf.xlu0
        %v912 = vpop.trf.xlu0
        %v913 = vpop.trf.xlu0
        %v914 = vpop.trf.xlu0
        %v915 = vpop.trf.xlu0
        %v916 = vpop.trf.xlu0
        %v917 = vpop.trf.xlu0
        %v918 = vpop.trf.xlu0
        %919 = vxpose.xlu0.b32.start [1/16] %v841, 128
        %920 = vxpose.xlu0.b32.cont [2/16] 0.0, 128
        %921 = vxpose.xlu0.b32.cont [3/16] 0.0, 128
        %922 = vxpose.xlu0.b32.cont [4/16] 0.0, 128
        %923 = vxpose.xlu0.b32.cont [5/16] 0.0, 128
        %924 = vxpose.xlu0.b32.cont [6/16] 0.0, 128
        %925 = vxpose.xlu0.b32.cont [7/16] 0.0, 128
        %926 = vxpose.xlu0.b32.cont [8/16] 0.0, 128
        %927 = vxpose.xlu0.b32.cont [9/16] 0.0, 128
        %928 = vxpose.xlu0.b32.cont [10/16] 0.0, 128
        %929 = vxpose.xlu0.b32.cont [11/16] 0.0, 128
        %930 = vxpose.xlu0.b32.cont [12/16] 0.0, 128
        %931 = vxpose.xlu0.b32.cont [13/16] 0.0, 128
        %932 = vxpose.xlu0.b32.cont [14/16] 0.0, 128
        %933 = vxpose.xlu0.b32.cont [15/16] 0.0, 128
        %934 = vxpose.xlu0.b32.end [16/16] 0.0, 128
        %v935 = vpop.trf.xlu0
        %v936 = vpop.trf.xlu0
        %v937 = vpop.trf.xlu0
        %v938 = vpop.trf.xlu0
        %v939 = vpop.trf.xlu0
        %v940 = vpop.trf.xlu0
        %v941 = vpop.trf.xlu0
        %v942 = vpop.trf.xlu0
        %v943 = vpop.trf.xlu0
        %v944 = vpop.trf.xlu0
        %v945 = vpop.trf.xlu0
        %v946 = vpop.trf.xlu0
        %v947 = vpop.trf.xlu0
        %v948 = vpop.trf.xlu0
        %v949 = vpop.trf.xlu0
        %v950 = vpop.trf.xlu0
        %951 = vxpose.xlu0.b32.start [1/16] %v842, 128
        %952 = vxpose.xlu0.b32.cont [2/16] 0.0, 128
        %953 = vxpose.xlu0.b32.cont [3/16] 0.0, 128
        %954 = vxpose.xlu0.b32.cont [4/16] 0.0, 128
        %955 = vxpose.xlu0.b32.cont [5/16] 0.0, 128
        %956 = vxpose.xlu0.b32.cont [6/16] 0.0, 128
        %957 = vxpose.xlu0.b32.cont [7/16] 0.0, 128
        %958 = vxpose.xlu0.b32.cont [8/16] 0.0, 128
        %959 = vxpose.xlu0.b32.cont [9/16] 0.0, 128
        %960 = vxpose.xlu0.b32.cont [10/16] 0.0, 128
        %961 = vxpose.xlu0.b32.cont [11/16] 0.0, 128
        %962 = vxpose.xlu0.b32.cont [12/16] 0.0, 128
        %963 = vxpose.xlu0.b32.cont [13/16] 0.0, 128
        %964 = vxpose.xlu0.b32.cont [14/16] 0.0, 128
        %965 = vxpose.xlu0.b32.cont [15/16] 0.0, 128
        %966 = vxpose.xlu0.b32.end [16/16] 0.0, 128
        %v967 = vpop.trf.xlu0
        %v968 = vpop.trf.xlu0
        %v969 = vpop.trf.xlu0
        %v970 = vpop.trf.xlu0
        %v971 = vpop.trf.xlu0
        %v972 = vpop.trf.xlu0
        %v973 = vpop.trf.xlu0
        %v974 = vpop.trf.xlu0
        %v975 = vpop.trf.xlu0
        %v976 = vpop.trf.xlu0
        %v977 = vpop.trf.xlu0
        %v978 = vpop.trf.xlu0
        %v979 = vpop.trf.xlu0
        %v980 = vpop.trf.xlu0
        %v981 = vpop.trf.xlu0
        %v982 = vpop.trf.xlu0
        %vm983 = vcmask 7168
        %984 = vst.msk [vmem:[#allocation5] sm:$0xff] %vm983, -1e+30
        %985 = vst.msk [vmem:[#allocation5 + $0x8] sm:$0xff] %vm983, -1e+30
        %986 = vst.msk [vmem:[#allocation5 + $0x10] sm:$0xff] %vm983, -1e+30
        %987 = vst.msk [vmem:[#allocation5 + $0x18] sm:$0xff] %vm983, -1e+30
        %988 = vst.msk [vmem:[#allocation6] sm:$0xff] %vm983, 0.0
        %989 = vst.msk [vmem:[#allocation6 + $0x8] sm:$0xff] %vm983, 0.0
        %990 = vst.msk [vmem:[#allocation6 + $0x10] sm:$0xff] %vm983, 0.0
        %991 = vst.msk [vmem:[#allocation6 + $0x18] sm:$0xff] %vm983, 0.0
        %vm992 = vcmask 64512
        %993 = vst.msk [vmem:[#allocation7] sm:$0xff] %vm992, 0.0
        %994 = vst.msk [vmem:[#allocation7 + $0x8] sm:$0xff] %vm992, 0.0
        %995 = vst.msk [vmem:[#allocation7 + $0x10] sm:$0xff] %vm992, 0.0
        %996 = vst.msk [vmem:[#allocation7 + $0x18] sm:$0xff] %vm992, 0.0
        // While loop
        $region85: #{tpu_custom_call.1} parent=79 // loop_pre_header
          _
        $region86: #{tpu_custom_call.1} parent=79 // loop_header
          %s998 = sphi 0, %s1000
          %p999 = scmp.ge.s32.totalorder %s998, %s34
        $region87: #{tpu_custom_call.1} parent=79 // loop_header_branch
          %1002 = sbr.rel (%p999) target = $region91
        $region88: #{tpu_custom_call.1} parent=79 // loop_body
          %s1003 = smul.u32 %s998, 32
          %s1004 = scalar_lea.vmem [#allocation3], %s1003
          %v1005 = vld [vmem:[%s1004] sm:$0xff]
          %v1006 = vld [vmem:[%s1004 + $0x8] sm:$0xff]
          %v1007 = vld [vmem:[%s1004 + $0x10] sm:$0xff]
          %v1008 = vld [vmem:[%s1004 + $0x18] sm:$0xff]
          %s1009 = scalar_lea.vmem [#allocation4], %s1003
          %v1010 = vld [vmem:[%s1009] sm:$0xff]
          %v1011 = vld [vmem:[%s1009 + $0x8] sm:$0xff]
          %v1012 = vld [vmem:[%s1009 + $0x10] sm:$0xff]
          %v1013 = vld [vmem:[%s1009 + $0x18] sm:$0xff]
          %v1015 = vsel %vm992, %v871, 0
          %1017 = vmatpush.msra.mxu0 0.0
          %1018 = vmatpush.msra.mxu0 0.0
          %1019 = vmatpush.msra.mxu0 0.0
          %1020 = vmatpush.msra.mxu0 0.0
          %1021 = vmatpush.msra.mxu0 0.0
          %1022 = vmatpush.msra.mxu0 0.0
          %1023 = vmatpush.msra.mxu0 0.0
          %1024 = vmatpush.msra.mxu0 0.0
          %1025 = vmatpush.msra.mxu0 0.0
          %1026 = vmatpush.msra.mxu0 0.0
          %1027 = vmatpush.msra.mxu0 0.0
          %1028 = vmatpush.msra.mxu0 0.0
          %1029 = vmatpush.msra.mxu0 0.0
          %1030 = vmatpush.msra.mxu0 0.0
          %1031 = vmatpush.msra.mxu0 0.0
          %1032 = vmatpush.msra.mxu0 %v1005
          %1033 = vmatmul.f32.gmra.mxu0 %v1015
          %v1034 = vpop.f32.mrf.mxu0
          %v1035 = vadd.f32 0.0, %v1034
          %1036 = vdwg.mxu0
          %v1038 = vsel %vm992, %v903, 0
          %1040 = vmatpush.msra.mxu0 0.0
          %1041 = vmatpush.msra.mxu0 0.0
          %1042 = vmatpush.msra.mxu0 0.0
          %1043 = vmatpush.msra.mxu0 0.0
          %1044 = vmatpush.msra.mxu0 0.0
          %1045 = vmatpush.msra.mxu0 0.0
          %1046 = vmatpush.msra.mxu0 0.0
          %1047 = vmatpush.msra.mxu0 0.0
          %1048 = vmatpush.msra.mxu0 0.0
          %1049 = vmatpush.msra.mxu0 0.0
          %1050 = vmatpush.msra.mxu0 0.0
          %1051 = vmatpush.msra.mxu0 0.0
          %1052 = vmatpush.msra.mxu0 0.0
          %1053 = vmatpush.msra.mxu0 0.0
          %1054 = vmatpush.msra.mxu0 0.0
          %1055 = vmatpush.msra.mxu0 %v1006
          %1056 = vmatmul.f32.gmra.mxu0 %v1038
          %v1057 = vpop.f32.mrf.mxu0
          %v1058 = vadd.f32 0.0, %v1057
          %1059 = vdwg.mxu0
          %v1061 = vsel %vm992, %v935, 0
          %1063 = vmatpush.msra.mxu0 0.0
          %1064 = vmatpush.msra.mxu0 0.0
          %1065 = vmatpush.msra.mxu0 0.0
          %1066 = vmatpush.msra.mxu0 0.0
          %1067 = vmatpush.msra.mxu0 0.0
          %1068 = vmatpush.msra.mxu0 0.0
          %1069 = vmatpush.msra.mxu0 0.0
          %1070 = vmatpush.msra.mxu0 0.0
          %1071 = vmatpush.msra.mxu0 0.0
          %1072 = vmatpush.msra.mxu0 0.0
          %1073 = vmatpush.msra.mxu0 0.0
          %1074 = vmatpush.msra.mxu0 0.0
          %1075 = vmatpush.msra.mxu0 0.0
          %1076 = vmatpush.msra.mxu0 0.0
          %1077 = vmatpush.msra.mxu0 0.0
          %1078 = vmatpush.msra.mxu0 %v1007
          %1079 = vmatmul.f32.gmra.mxu0 %v1061
          %v1080 = vpop.f32.mrf.mxu0
          %v1081 = vadd.f32 0.0, %v1080
          %1082 = vdwg.mxu0
          %v1084 = vsel %vm992, %v967, 0
          %1086 = vmatpush.msra.mxu0 0.0
          %1087 = vmatpush.msra.mxu0 0.0
          %1088 = vmatpush.msra.mxu0 0.0
          %1089 = vmatpush.msra.mxu0 0.0
          %1090 = vmatpush.msra.mxu0 0.0
          %1091 = vmatpush.msra.mxu0 0.0
          %1092 = vmatpush.msra.mxu0 0.0
          %1093 = vmatpush.msra.mxu0 0.0
          %1094 = vmatpush.msra.mxu0 0.0
          %1095 = vmatpush.msra.mxu0 0.0
          %1096 = vmatpush.msra.mxu0 0.0
          %1097 = vmatpush.msra.mxu0 0.0
          %1098 = vmatpush.msra.mxu0 0.0
          %1099 = vmatpush.msra.mxu0 0.0
          %1100 = vmatpush.msra.mxu0 0.0
          %1101 = vmatpush.msra.mxu0 %v1008
          %1102 = vmatmul.f32.gmra.mxu0 %v1084
          %v1103 = vpop.f32.mrf.mxu0
          %v1104 = vadd.f32 0.0, %v1103
          %1105 = vdwg.mxu0
          %v1106 = vld [vmem:[#allocation5] sm:$0xff]
          %v1107 = vld [vmem:[#allocation5 + $0x8] sm:$0xff]
          %v1108 = vld [vmem:[#allocation5 + $0x10] sm:$0xff]
          %v1109 = vld [vmem:[#allocation5 + $0x18] sm:$0xff]
          %v1110 = vsel %vm992, %v1035, -inf
          %1111 = vmax.xlane.f32.xlu0 %v1110
          %v1112 = vpop.xlane.xlu0 %1111
          %v1113 = vsel %vm992, %v1058, -inf
          %1114 = vmax.xlane.f32.xlu0 %v1113
          %v1115 = vpop.xlane.xlu0 %1114
          %v1116 = vsel %vm992, %v1081, -inf
          %1117 = vmax.xlane.f32.xlu0 %v1116
          %v1118 = vpop.xlane.xlu0 %1117
          %v1119 = vsel %vm992, %v1104, -inf
          %1120 = vmax.xlane.f32.xlu0 %v1119
          %v1121 = vpop.xlane.xlu0 %1120
          %v1122 = vmax.f32 %v1106, %v1112
          %v1123 = vmax.f32 %v1107, %v1115
          %v1124 = vmax.f32 %v1108, %v1118
          %v1125 = vmax.f32 %v1109, %v1121
          %v1126 = vsub.f32 %v1106, %v1122
          %v1127 = vsub.f32 %v1107, %v1123
          %v1128 = vsub.f32 %v1108, %v1124
          %v1129 = vsub.f32 %v1109, %v1125
          %v1130 = vmul.f32 %v1126, 1.442695
          %v1131 = vpow.pop %v1130
          %v1132 = vmul.f32 %v1127, 1.442695
          %v1133 = vpow.pop %v1132
          %v1134 = vmul.f32 %v1128, 1.442695
          %v1135 = vpow.pop %v1134
          %v1136 = vmul.f32 %v1129, 1.442695
          %v1137 = vpow.pop %v1136
          %1139 = vset.pattern.permute.xlu0 0
          %1140 = vperm.xlu0 %1139, %v1122
          %v1141 = vpop.permute.xlu0 %1140
          %1144 = vset.pattern.permute.xlu0 0
          %1145 = vperm.xlu0 %1144, %v1123
          %v1146 = vpop.permute.xlu0 %1145
          %1149 = vset.pattern.permute.xlu0 0
          %1150 = vperm.xlu0 %1149, %v1124
          %v1151 = vpop.permute.xlu0 %1150
          %1154 = vset.pattern.permute.xlu0 0
          %1155 = vperm.xlu0 %1154, %v1125
          %v1156 = vpop.permute.xlu0 %1155
          %v1158 = vsub.f32 %v1035, %v1141
          %v1159 = vsub.f32 %v1058, %v1146
          %v1160 = vsub.f32 %v1081, %v1151
          %v1161 = vsub.f32 %v1104, %v1156
          %v1162 = vmul.f32 %v1158, 1.442695
          %v1163 = vpow.pop %v1162
          %v1164 = vmul.f32 %v1159, 1.442695
          %v1165 = vpow.pop %v1164
          %v1166 = vmul.f32 %v1160, 1.442695
          %v1167 = vpow.pop %v1166
          %v1168 = vmul.f32 %v1161, 1.442695
          %v1169 = vpow.pop %v1168
          %v1170 = vld [vmem:[#allocation6] sm:$0xff]
          %v1171 = vld [vmem:[#allocation6 + $0x8] sm:$0xff]
          %v1172 = vld [vmem:[#allocation6 + $0x10] sm:$0xff]
          %v1173 = vld [vmem:[#allocation6 + $0x18] sm:$0xff]
          %v1174 = vmul.f32 %v1131, %v1170
          %v1175 = vmul.f32 %v1133, %v1171
          %v1176 = vmul.f32 %v1135, %v1172
          %v1177 = vmul.f32 %v1137, %v1173
          %v1178 = vsel %vm992, %v1163, 0.0
          %1179 = vadd.xlane.f32.xlu0 %v1178
          %v1180 = vpop.xlane.xlu0 %1179
          %v1181 = vsel %vm992, %v1165, 0.0
          %1182 = vadd.xlane.f32.xlu0 %v1181
          %v1183 = vpop.xlane.xlu0 %1182
          %v1184 = vsel %vm992, %v1167, 0.0
          %1185 = vadd.xlane.f32.xlu0 %v1184
          %v1186 = vpop.xlane.xlu0 %1185
          %v1187 = vsel %vm992, %v1169, 0.0
          %1188 = vadd.xlane.f32.xlu0 %v1187
          %v1189 = vpop.xlane.xlu0 %1188
          %v1190 = vadd.f32 %v1174, %v1180
          %v1191 = vadd.f32 %v1175, %v1183
          %v1192 = vadd.f32 %v1176, %v1186
          %v1193 = vadd.f32 %v1177, %v1189
          %1194 = vst.msk [vmem:[#allocation6] sm:$0xff] %vm983, %v1190
          %1195 = vst.msk [vmem:[#allocation6 + $0x8] sm:$0xff] %vm983, %v1191
          %1196 = vst.msk [vmem:[#allocation6 + $0x10] sm:$0xff] %vm983, %v1192
          %1197 = vst.msk [vmem:[#allocation6 + $0x18] sm:$0xff] %vm983, %v1193
          %v1198 = vld [vmem:[#allocation7] sm:$0xff]
          %v1199 = vld [vmem:[#allocation7 + $0x8] sm:$0xff]
          %v1200 = vld [vmem:[#allocation7 + $0x10] sm:$0xff]
          %v1201 = vld [vmem:[#allocation7 + $0x18] sm:$0xff]
          %1203 = vset.pattern.permute.xlu0 0
          %1204 = vperm.xlu0 %1203, %v1131
          %v1205 = vpop.permute.xlu0 %1204
          %1208 = vset.pattern.permute.xlu0 0
          %1209 = vperm.xlu0 %1208, %v1133
          %v1210 = vpop.permute.xlu0 %1209
          %1213 = vset.pattern.permute.xlu0 0
          %1214 = vperm.xlu0 %1213, %v1135
          %v1215 = vpop.permute.xlu0 %1214
          %1218 = vset.pattern.permute.xlu0 0
          %1219 = vperm.xlu0 %1218, %v1137
          %v1220 = vpop.permute.xlu0 %1219
          %v1222 = vmul.f32 %v1205, %v1198
          %v1223 = vmul.f32 %v1210, %v1199
          %v1224 = vmul.f32 %v1215, %v1200
          %v1225 = vmul.f32 %v1220, %v1201
          %v1227 = vsel %vm992, %v1163, 0
          %1229 = vmatpush.msra.mxu0 0.0
          %1230 = vmatpush.msra.mxu0 0.0
          %1231 = vmatpush.msra.mxu0 0.0
          %1232 = vmatpush.msra.mxu0 0.0
          %1233 = vmatpush.msra.mxu0 0.0
          %1234 = vmatpush.msra.mxu0 0.0
          %1235 = vmatpush.msra.mxu0 0.0
          %1236 = vmatpush.msra.mxu0 0.0
          %1237 = vmatpush.msra.mxu0 0.0
          %1238 = vmatpush.msra.mxu0 0.0
          %1239 = vmatpush.msra.mxu0 0.0
          %1240 = vmatpush.msra.mxu0 0.0
          %1241 = vmatpush.msra.mxu0 0.0
          %1242 = vmatpush.msra.mxu0 0.0
          %1243 = vmatpush.msra.mxu0 0.0
          %1244 = vmatpush.msra.mxu0 %v1010
          %1245 = vmatmul.f32.gmra.mxu0 %v1227
          %v1246 = vpop.f32.mrf.mxu0
          %v1247 = vadd.f32 0.0, %v1246
          %1248 = vdwg.mxu0
          %v1250 = vsel %vm992, %v1165, 0
          %1252 = vmatpush.msra.mxu0 0.0
          %1253 = vmatpush.msra.mxu0 0.0
          %1254 = vmatpush.msra.mxu0 0.0
          %1255 = vmatpush.msra.mxu0 0.0
          %1256 = vmatpush.msra.mxu0 0.0
          %1257 = vmatpush.msra.mxu0 0.0
          %1258 = vmatpush.msra.mxu0 0.0
          %1259 = vmatpush.msra.mxu0 0.0
          %1260 = vmatpush.msra.mxu0 0.0
          %1261 = vmatpush.msra.mxu0 0.0
          %1262 = vmatpush.msra.mxu0 0.0
          %1263 = vmatpush.msra.mxu0 0.0
          %1264 = vmatpush.msra.mxu0 0.0
          %1265 = vmatpush.msra.mxu0 0.0
          %1266 = vmatpush.msra.mxu0 0.0
          %1267 = vmatpush.msra.mxu0 %v1011
          %1268 = vmatmul.f32.gmra.mxu0 %v1250
          %v1269 = vpop.f32.mrf.mxu0
          %v1270 = vadd.f32 0.0, %v1269
          %1271 = vdwg.mxu0
          %v1273 = vsel %vm992, %v1167, 0
          %1275 = vmatpush.msra.mxu0 0.0
          %1276 = vmatpush.msra.mxu0 0.0
          %1277 = vmatpush.msra.mxu0 0.0
          %1278 = vmatpush.msra.mxu0 0.0
          %1279 = vmatpush.msra.mxu0 0.0
          %1280 = vmatpush.msra.mxu0 0.0
          %1281 = vmatpush.msra.mxu0 0.0
          %1282 = vmatpush.msra.mxu0 0.0
          %1283 = vmatpush.msra.mxu0 0.0
          %1284 = vmatpush.msra.mxu0 0.0
          %1285 = vmatpush.msra.mxu0 0.0
          %1286 = vmatpush.msra.mxu0 0.0
          %1287 = vmatpush.msra.mxu0 0.0
          %1288 = vmatpush.msra.mxu0 0.0
          %1289 = vmatpush.msra.mxu0 0.0
          %1290 = vmatpush.msra.mxu0 %v1012
          %1291 = vmatmul.f32.gmra.mxu0 %v1273
          %v1292 = vpop.f32.mrf.mxu0
          %v1293 = vadd.f32 0.0, %v1292
          %1294 = vdwg.mxu0
          %v1296 = vsel %vm992, %v1169, 0
          %1298 = vmatpush.msra.mxu0 0.0
          %1299 = vmatpush.msra.mxu0 0.0
          %1300 = vmatpush.msra.mxu0 0.0
          %1301 = vmatpush.msra.mxu0 0.0
          %1302 = vmatpush.msra.mxu0 0.0
          %1303 = vmatpush.msra.mxu0 0.0
          %1304 = vmatpush.msra.mxu0 0.0
          %1305 = vmatpush.msra.mxu0 0.0
          %1306 = vmatpush.msra.mxu0 0.0
          %1307 = vmatpush.msra.mxu0 0.0
          %1308 = vmatpush.msra.mxu0 0.0
          %1309 = vmatpush.msra.mxu0 0.0
          %1310 = vmatpush.msra.mxu0 0.0
          %1311 = vmatpush.msra.mxu0 0.0
          %1312 = vmatpush.msra.mxu0 0.0
          %1313 = vmatpush.msra.mxu0 %v1013
          %1314 = vmatmul.f32.gmra.mxu0 %v1296
          %v1315 = vpop.f32.mrf.mxu0
          %v1316 = vadd.f32 0.0, %v1315
          %1317 = vdwg.mxu0
          %v1318 = vadd.f32 %v1222, %v1247
          %v1319 = vadd.f32 %v1223, %v1270
          %v1320 = vadd.f32 %v1224, %v1293
          %v1321 = vadd.f32 %v1225, %v1316
          %1322 = vst.msk [vmem:[#allocation7] sm:$0xff] %vm992, %v1318
          %1323 = vst.msk [vmem:[#allocation7 + $0x8] sm:$0xff] %vm992, %v1319
          %1324 = vst.msk [vmem:[#allocation7 + $0x10] sm:$0xff] %vm992, %v1320
          %1325 = vst.msk [vmem:[#allocation7 + $0x18] sm:$0xff] %vm992, %v1321
          %1326 = vst.msk [vmem:[#allocation5] sm:$0xff] %vm983, %v1122
          %1327 = vst.msk [vmem:[#allocation5 + $0x8] sm:$0xff] %vm983, %v1123
          %1328 = vst.msk [vmem:[#allocation5 + $0x10] sm:$0xff] %vm983, %v1124
          %1329 = vst.msk [vmem:[#allocation5 + $0x18] sm:$0xff] %vm983, %v1125
        $region89: #{tpu_custom_call.1} parent=79 // loop_footer
          %s1000 = sadd.s32 %s998, 1
        $region90: #{tpu_custom_call.1} parent=79 // loop_footer_branch
          %997 = sbr.rel target = $region86
        $region91: #{tpu_custom_call.1} parent=79 // loop_exit
          _
        %s1330 = smul.u32 %s34, 32
        %s1331 = scalar_lea.vmem [#allocation3], %s1330
        %v1332 = vld [vmem:[%s1331] sm:$0xff]
        %v1333 = vld [vmem:[%s1331 + $0x8] sm:$0xff]
        %v1334 = vld [vmem:[%s1331 + $0x10] sm:$0xff]
        %v1335 = vld [vmem:[%s1331 + $0x18] sm:$0xff]
        %s1336 = scalar_lea.vmem [#allocation4], %s1330
        %v1337 = vld [vmem:[%s1336] sm:$0xff]
        %v1338 = vld [vmem:[%s1336 + $0x8] sm:$0xff]
        %v1339 = vld [vmem:[%s1336 + $0x10] sm:$0xff]
        %v1340 = vld [vmem:[%s1336 + $0x18] sm:$0xff]
        %v1342 = vsel %vm992, %v871, 0
        %1344 = vmatpush.msra.mxu0 0.0
        %1345 = vmatpush.msra.mxu0 0.0
        %1346 = vmatpush.msra.mxu0 0.0
        %1347 = vmatpush.msra.mxu0 0.0
        %1348 = vmatpush.msra.mxu0 0.0
        %1349 = vmatpush.msra.mxu0 0.0
        %1350 = vmatpush.msra.mxu0 0.0
        %1351 = vmatpush.msra.mxu0 0.0
        %1352 = vmatpush.msra.mxu0 0.0
        %1353 = vmatpush.msra.mxu0 0.0
        %1354 = vmatpush.msra.mxu0 0.0
        %1355 = vmatpush.msra.mxu0 0.0
        %1356 = vmatpush.msra.mxu0 0.0
        %1357 = vmatpush.msra.mxu0 0.0
        %1358 = vmatpush.msra.mxu0 0.0
        %1359 = vmatpush.msra.mxu0 %v1332
        %1360 = vmatmul.f32.gmra.mxu0 %v1342
        %v1361 = vpop.f32.mrf.mxu0
        %v1362 = vadd.f32 0.0, %v1361
        %1363 = vdwg.mxu0
        %v1365 = vsel %vm992, %v903, 0
        %1367 = vmatpush.msra.mxu0 0.0
        %1368 = vmatpush.msra.mxu0 0.0
        %1369 = vmatpush.msra.mxu0 0.0
        %1370 = vmatpush.msra.mxu0 0.0
        %1371 = vmatpush.msra.mxu0 0.0
        %1372 = vmatpush.msra.mxu0 0.0
        %1373 = vmatpush.msra.mxu0 0.0
        %1374 = vmatpush.msra.mxu0 0.0
        %1375 = vmatpush.msra.mxu0 0.0
        %1376 = vmatpush.msra.mxu0 0.0
        %1377 = vmatpush.msra.mxu0 0.0
        %1378 = vmatpush.msra.mxu0 0.0
        %1379 = vmatpush.msra.mxu0 0.0
        %1380 = vmatpush.msra.mxu0 0.0
        %1381 = vmatpush.msra.mxu0 0.0
        %1382 = vmatpush.msra.mxu0 %v1333
        %1383 = vmatmul.f32.gmra.mxu0 %v1365
        %v1384 = vpop.f32.mrf.mxu0
        %v1385 = vadd.f32 0.0, %v1384
        %1386 = vdwg.mxu0
        %v1388 = vsel %vm992, %v935, 0
        %1390 = vmatpush.msra.mxu0 0.0
        %1391 = vmatpush.msra.mxu0 0.0
        %1392 = vmatpush.msra.mxu0 0.0
        %1393 = vmatpush.msra.mxu0 0.0
        %1394 = vmatpush.msra.mxu0 0.0
        %1395 = vmatpush.msra.mxu0 0.0
        %1396 = vmatpush.msra.mxu0 0.0
        %1397 = vmatpush.msra.mxu0 0.0
        %1398 = vmatpush.msra.mxu0 0.0
        %1399 = vmatpush.msra.mxu0 0.0
        %1400 = vmatpush.msra.mxu0 0.0
        %1401 = vmatpush.msra.mxu0 0.0
        %1402 = vmatpush.msra.mxu0 0.0
        %1403 = vmatpush.msra.mxu0 0.0
        %1404 = vmatpush.msra.mxu0 0.0
        %1405 = vmatpush.msra.mxu0 %v1334
        %1406 = vmatmul.f32.gmra.mxu0 %v1388
        %v1407 = vpop.f32.mrf.mxu0
        %v1408 = vadd.f32 0.0, %v1407
        %1409 = vdwg.mxu0
        %v1411 = vsel %vm992, %v967, 0
        %1413 = vmatpush.msra.mxu0 0.0
        %1414 = vmatpush.msra.mxu0 0.0
        %1415 = vmatpush.msra.mxu0 0.0
        %1416 = vmatpush.msra.mxu0 0.0
        %1417 = vmatpush.msra.mxu0 0.0
        %1418 = vmatpush.msra.mxu0 0.0
        %1419 = vmatpush.msra.mxu0 0.0
        %1420 = vmatpush.msra.mxu0 0.0
        %1421 = vmatpush.msra.mxu0 0.0
        %1422 = vmatpush.msra.mxu0 0.0
        %1423 = vmatpush.msra.mxu0 0.0
        %1424 = vmatpush.msra.mxu0 0.0
        %1425 = vmatpush.msra.mxu0 0.0
        %1426 = vmatpush.msra.mxu0 0.0
        %1427 = vmatpush.msra.mxu0 0.0
        %1428 = vmatpush.msra.mxu0 %v1335
        %1429 = vmatmul.f32.gmra.mxu0 %v1411
        %v1430 = vpop.f32.mrf.mxu0
        %v1431 = vadd.f32 0.0, %v1430
        %1432 = vdwg.mxu0
        %v1433 = vlaneseq
        %v1434 = vshrl.u32 %v1433, 7
        %v1435 = vlaneseq
        %v1436 = vand.u32 %v1435, 127
        %vm1437 = vcmp.ge.s32.totalorder %v1434, %v1436
        %v1438 = vsel %vm1437, 1, 0
        %vm1439 = vcmp.eq.s32.totalorder %v1438, 1
        %v1440 = vsel %vm1439, %v1362, -1e+30
        %v1441 = vsel %vm1439, %v1385, -1e+30
        %v1442 = vsel %vm1439, %v1408, -1e+30
        %v1443 = vsel %vm1439, %v1431, -1e+30
        %v1444 = vld [vmem:[#allocation5] sm:$0xff]
        %v1445 = vld [vmem:[#allocation5 + $0x8] sm:$0xff]
        %v1446 = vld [vmem:[#allocation5 + $0x10] sm:$0xff]
        %v1447 = vld [vmem:[#allocation5 + $0x18] sm:$0xff]
        %v1448 = vsel %vm992, %v1440, -inf
        %1449 = vmax.xlane.f32.xlu0 %v1448
        %v1450 = vpop.xlane.xlu0 %1449
        %v1451 = vsel %vm992, %v1441, -inf
        %1452 = vmax.xlane.f32.xlu0 %v1451
        %v1453 = vpop.xlane.xlu0 %1452
        %v1454 = vsel %vm992, %v1442, -inf
        %1455 = vmax.xlane.f32.xlu0 %v1454
        %v1456 = vpop.xlane.xlu0 %1455
        %v1457 = vsel %vm992, %v1443, -inf
        %1458 = vmax.xlane.f32.xlu0 %v1457
        %v1459 = vpop.xlane.xlu0 %1458
        %v1460 = vmax.f32 %v1444, %v1450
        %v1461 = vmax.f32 %v1445, %v1453
        %v1462 = vmax.f32 %v1446, %v1456
        %v1463 = vmax.f32 %v1447, %v1459
        %v1464 = vsub.f32 %v1444, %v1460
        %v1465 = vsub.f32 %v1445, %v1461
        %v1466 = vsub.f32 %v1446, %v1462
        %v1467 = vsub.f32 %v1447, %v1463
        %v1468 = vmul.f32 %v1464, 1.442695
        %v1469 = vpow.pop %v1468
        %v1470 = vmul.f32 %v1465, 1.442695
        %v1471 = vpow.pop %v1470
        %v1472 = vmul.f32 %v1466, 1.442695
        %v1473 = vpow.pop %v1472
        %v1474 = vmul.f32 %v1467, 1.442695
        %v1475 = vpow.pop %v1474
        %1477 = vset.pattern.permute.xlu0 0
        %1478 = vperm.xlu0 %1477, %v1460
        %v1479 = vpop.permute.xlu0 %1478
        %1482 = vset.pattern.permute.xlu0 0
        %1483 = vperm.xlu0 %1482, %v1461
        %v1484 = vpop.permute.xlu0 %1483
        %1487 = vset.pattern.permute.xlu0 0
        %1488 = vperm.xlu0 %1487, %v1462
        %v1489 = vpop.permute.xlu0 %1488
        %1492 = vset.pattern.permute.xlu0 0
        %1493 = vperm.xlu0 %1492, %v1463
        %v1494 = vpop.permute.xlu0 %1493
        %v1496 = vsub.f32 %v1440, %v1479
        %v1497 = vsub.f32 %v1441, %v1484
        %v1498 = vsub.f32 %v1442, %v1489
        %v1499 = vsub.f32 %v1443, %v1494
        %v1500 = vmul.f32 %v1496, 1.442695
        %v1501 = vpow.pop %v1500
        %v1502 = vmul.f32 %v1497, 1.442695
        %v1503 = vpow.pop %v1502
        %v1504 = vmul.f32 %v1498, 1.442695
        %v1505 = vpow.pop %v1504
        %v1506 = vmul.f32 %v1499, 1.442695
        %v1507 = vpow.pop %v1506
        %v1508 = vld [vmem:[#allocation6] sm:$0xff]
        %v1509 = vld [vmem:[#allocation6 + $0x8] sm:$0xff]
        %v1510 = vld [vmem:[#allocation6 + $0x10] sm:$0xff]
        %v1511 = vld [vmem:[#allocation6 + $0x18] sm:$0xff]
        %v1512 = vmul.f32 %v1469, %v1508
        %v1513 = vmul.f32 %v1471, %v1509
        %v1514 = vmul.f32 %v1473, %v1510
        %v1515 = vmul.f32 %v1475, %v1511
        %v1516 = vsel %vm992, %v1501, 0.0
        %1517 = vadd.xlane.f32.xlu0 %v1516
        %v1518 = vpop.xlane.xlu0 %1517
        %v1519 = vsel %vm992, %v1503, 0.0
        %1520 = vadd.xlane.f32.xlu0 %v1519
        %v1521 = vpop.xlane.xlu0 %1520
        %v1522 = vsel %vm992, %v1505, 0.0
        %1523 = vadd.xlane.f32.xlu0 %v1522
        %v1524 = vpop.xlane.xlu0 %1523
        %v1525 = vsel %vm992, %v1507, 0.0
        %1526 = vadd.xlane.f32.xlu0 %v1525
        %v1527 = vpop.xlane.xlu0 %1526
        %v1528 = vadd.f32 %v1512, %v1518
        %v1529 = vadd.f32 %v1513, %v1521
        %v1530 = vadd.f32 %v1514, %v1524
        %v1531 = vadd.f32 %v1515, %v1527
        %1532 = vst.msk [vmem:[#allocation6] sm:$0xff] %vm983, %v1528
        %1533 = vst.msk [vmem:[#allocation6 + $0x8] sm:$0xff] %vm983, %v1529
        %1534 = vst.msk [vmem:[#allocation6 + $0x10] sm:$0xff] %vm983, %v1530
        %1535 = vst.msk [vmem:[#allocation6 + $0x18] sm:$0xff] %vm983, %v1531
        %v1536 = vld [vmem:[#allocation7] sm:$0xff]
        %v1537 = vld [vmem:[#allocation7 + $0x8] sm:$0xff]
        %v1538 = vld [vmem:[#allocation7 + $0x10] sm:$0xff]
        %v1539 = vld [vmem:[#allocation7 + $0x18] sm:$0xff]
        %1541 = vset.pattern.permute.xlu0 0
        %1542 = vperm.xlu0 %1541, %v1469
        %v1543 = vpop.permute.xlu0 %1542
        %1546 = vset.pattern.permute.xlu0 0
        %1547 = vperm.xlu0 %1546, %v1471
        %v1548 = vpop.permute.xlu0 %1547
        %1551 = vset.pattern.permute.xlu0 0
        %1552 = vperm.xlu0 %1551, %v1473
        %v1553 = vpop.permute.xlu0 %1552
        %1556 = vset.pattern.permute.xlu0 0
        %1557 = vperm.xlu0 %1556, %v1475
        %v1558 = vpop.permute.xlu0 %1557
        %v1560 = vmul.f32 %v1543, %v1536
        %v1561 = vmul.f32 %v1548, %v1537
        %v1562 = vmul.f32 %v1553, %v1538
        %v1563 = vmul.f32 %v1558, %v1539
        %v1565 = vsel %vm992, %v1501, 0
        %1567 = vmatpush.msra.mxu0 0.0
        %1568 = vmatpush.msra.mxu0 0.0
        %1569 = vmatpush.msra.mxu0 0.0
        %1570 = vmatpush.msra.mxu0 0.0
        %1571 = vmatpush.msra.mxu0 0.0
        %1572 = vmatpush.msra.mxu0 0.0
        %1573 = vmatpush.msra.mxu0 0.0
        %1574 = vmatpush.msra.mxu0 0.0
        %1575 = vmatpush.msra.mxu0 0.0
        %1576 = vmatpush.msra.mxu0 0.0
        %1577 = vmatpush.msra.mxu0 0.0
        %1578 = vmatpush.msra.mxu0 0.0
        %1579 = vmatpush.msra.mxu0 0.0
        %1580 = vmatpush.msra.mxu0 0.0
        %1581 = vmatpush.msra.mxu0 0.0
        %1582 = vmatpush.msra.mxu0 %v1337
        %1583 = vmatmul.f32.gmra.mxu0 %v1565
        %v1584 = vpop.f32.mrf.mxu0
        %v1585 = vadd.f32 0.0, %v1584
        %1586 = vdwg.mxu0
        %v1588 = vsel %vm992, %v1503, 0
        %1590 = vmatpush.msra.mxu0 0.0
        %1591 = vmatpush.msra.mxu0 0.0
        %1592 = vmatpush.msra.mxu0 0.0
        %1593 = vmatpush.msra.mxu0 0.0
        %1594 = vmatpush.msra.mxu0 0.0
        %1595 = vmatpush.msra.mxu0 0.0
        %1596 = vmatpush.msra.mxu0 0.0
        %1597 = vmatpush.msra.mxu0 0.0
        %1598 = vmatpush.msra.mxu0 0.0
        %1599 = vmatpush.msra.mxu0 0.0
        %1600 = vmatpush.msra.mxu0 0.0
        %1601 = vmatpush.msra.mxu0 0.0
        %1602 = vmatpush.msra.mxu0 0.0
        %1603 = vmatpush.msra.mxu0 0.0
        %1604 = vmatpush.msra.mxu0 0.0
        %1605 = vmatpush.msra.mxu0 %v1338
        %1606 = vmatmul.f32.gmra.mxu0 %v1588
        %v1607 = vpop.f32.mrf.mxu0
        %v1608 = vadd.f32 0.0, %v1607
        %1609 = vdwg.mxu0
        %v1611 = vsel %vm992, %v1505, 0
        %1613 = vmatpush.msra.mxu0 0.0
        %1614 = vmatpush.msra.mxu0 0.0
        %1615 = vmatpush.msra.mxu0 0.0
        %1616 = vmatpush.msra.mxu0 0.0
        %1617 = vmatpush.msra.mxu0 0.0
        %1618 = vmatpush.msra.mxu0 0.0
        %1619 = vmatpush.msra.mxu0 0.0
        %1620 = vmatpush.msra.mxu0 0.0
        %1621 = vmatpush.msra.mxu0 0.0
        %1622 = vmatpush.msra.mxu0 0.0
        %1623 = vmatpush.msra.mxu0 0.0
        %1624 = vmatpush.msra.mxu0 0.0
        %1625 = vmatpush.msra.mxu0 0.0
        %1626 = vmatpush.msra.mxu0 0.0
        %1627 = vmatpush.msra.mxu0 0.0
        %1628 = vmatpush.msra.mxu0 %v1339
        %1629 = vmatmul.f32.gmra.mxu0 %v1611
        %v1630 = vpop.f32.mrf.mxu0
        %v1631 = vadd.f32 0.0, %v1630
        %1632 = vdwg.mxu0
        %v1634 = vsel %vm992, %v1507, 0
        %1636 = vmatpush.msra.mxu0 0.0
        %1637 = vmatpush.msra.mxu0 0.0
        %1638 = vmatpush.msra.mxu0 0.0
        %1639 = vmatpush.msra.mxu0 0.0
        %1640 = vmatpush.msra.mxu0 0.0
        %1641 = vmatpush.msra.mxu0 0.0
        %1642 = vmatpush.msra.mxu0 0.0
        %1643 = vmatpush.msra.mxu0 0.0
        %1644 = vmatpush.msra.mxu0 0.0
        %1645 = vmatpush.msra.mxu0 0.0
        %1646 = vmatpush.msra.mxu0 0.0
        %1647 = vmatpush.msra.mxu0 0.0
        %1648 = vmatpush.msra.mxu0 0.0
        %1649 = vmatpush.msra.mxu0 0.0
        %1650 = vmatpush.msra.mxu0 0.0
        %1651 = vmatpush.msra.mxu0 %v1340
        %1652 = vmatmul.f32.gmra.mxu0 %v1634
        %v1653 = vpop.f32.mrf.mxu0
        %v1654 = vadd.f32 0.0, %v1653
        %1655 = vdwg.mxu0
        %v1656 = vadd.f32 %v1560, %v1585
        %v1657 = vadd.f32 %v1561, %v1608
        %v1658 = vadd.f32 %v1562, %v1631
        %v1659 = vadd.f32 %v1563, %v1654
        %1660 = vst.msk [vmem:[#allocation7] sm:$0xff] %vm992, %v1656
        %1661 = vst.msk [vmem:[#allocation7 + $0x8] sm:$0xff] %vm992, %v1657
        %1662 = vst.msk [vmem:[#allocation7 + $0x10] sm:$0xff] %vm992, %v1658
        %1663 = vst.msk [vmem:[#allocation7 + $0x18] sm:$0xff] %vm992, %v1659
        %1664 = vst.msk [vmem:[#allocation5] sm:$0xff] %vm983, %v1460
        %1665 = vst.msk [vmem:[#allocation5 + $0x8] sm:$0xff] %vm983, %v1461
        %1666 = vst.msk [vmem:[#allocation5 + $0x10] sm:$0xff] %vm983, %v1462
        %1667 = vst.msk [vmem:[#allocation5 + $0x18] sm:$0xff] %vm983, %v1463
        %v1668 = vld [vmem:[#allocation6] sm:$0xff]
        %v1669 = vld [vmem:[#allocation6 + $0x8] sm:$0xff]
        %v1670 = vld [vmem:[#allocation6 + $0x10] sm:$0xff]
        %v1671 = vld [vmem:[#allocation6 + $0x18] sm:$0xff]
        %v1672 = vrcp.pop %v1668
        %v1673 = vrcp.pop %v1669
        %v1674 = vrcp.pop %v1670
        %v1675 = vrcp.pop %v1671
        %v1676 = vmul.f32 %v1668, %v1672
        %v1677 = vmul.f32 %v1669, %v1673
        %v1678 = vmul.f32 %v1670, %v1674
        %v1679 = vmul.f32 %v1671, %v1675
        %v1680 = vsub.f32 2.0, %v1676
        %v1681 = vsub.f32 2.0, %v1677
        %v1682 = vsub.f32 2.0, %v1678
        %v1683 = vsub.f32 2.0, %v1679
        %v1684 = vmul.f32 %v1672, %v1680
        %v1685 = vmul.f32 %v1673, %v1681
        %v1686 = vmul.f32 %v1674, %v1682
        %v1687 = vmul.f32 %v1675, %v1683
        %v1688 = vld [vmem:[#allocation7] sm:$0xff]
        %v1689 = vld [vmem:[#allocation7 + $0x8] sm:$0xff]
        %v1690 = vld [vmem:[#allocation7 + $0x10] sm:$0xff]
        %v1691 = vld [vmem:[#allocation7 + $0x18] sm:$0xff]
        %1693 = vset.pattern.permute.xlu0 0
        %1694 = vperm.xlu0 %1693, %v1684
        %v1695 = vpop.permute.xlu0 %1694
        %1698 = vset.pattern.permute.xlu0 0
        %1699 = vperm.xlu0 %1698, %v1685
        %v1700 = vpop.permute.xlu0 %1699
        %1703 = vset.pattern.permute.xlu0 0
        %1704 = vperm.xlu0 %1703, %v1686
        %v1705 = vpop.permute.xlu0 %1704
        %1708 = vset.pattern.permute.xlu0 0
        %1709 = vperm.xlu0 %1708, %v1687
        %v1710 = vpop.permute.xlu0 %1709
        %v1712 = vmul.f32 %v1688, %v1695
        %v1713 = vmul.f32 %v1689, %v1700
        %v1714 = vmul.f32 %v1690, %v1705
        %v1715 = vmul.f32 %v1691, %v1710
        %1716 = vxpose.xlu0.b32.start [1/16] %v1712, 128
        %1717 = vxpose.xlu0.b32.cont [2/16] 0.0, 128
        %1718 = vxpose.xlu0.b32.cont [3/16] 0.0, 128
        %1719 = vxpose.xlu0.b32.cont [4/16] 0.0, 128
        %1720 = vxpose.xlu0.b32.cont [5/16] 0.0, 128
        %1721 = vxpose.xlu0.b32.cont [6/16] 0.0, 128
        %1722 = vxpose.xlu0.b32.cont [7/16] 0.0, 128
        %1723 = vxpose.xlu0.b32.cont [8/16] 0.0, 128
        %1724 = vxpose.xlu0.b32.cont [9/16] 0.0, 128
        %1725 = vxpose.xlu0.b32.cont [10/16] 0.0, 128
        %1726 = vxpose.xlu0.b32.cont [11/16] 0.0, 128
        %1727 = vxpose.xlu0.b32.cont [12/16] 0.0, 128
        %1728 = vxpose.xlu0.b32.cont [13/16] 0.0, 128
        %1729 = vxpose.xlu0.b32.cont [14/16] 0.0, 128
        %1730 = vxpose.xlu0.b32.cont [15/16] 0.0, 128
        %1731 = vxpose.xlu0.b32.end [16/16] 0.0, 128
        %v1732 = vpop.trf.xlu0
        %v1733 = vpop.trf.xlu0
        %v1734 = vpop.trf.xlu0
        %v1735 = vpop.trf.xlu0
        %v1736 = vpop.trf.xlu0
        %v1737 = vpop.trf.xlu0
        %v1738 = vpop.trf.xlu0
        %v1739 = vpop.trf.xlu0
        %v1740 = vpop.trf.xlu0
        %v1741 = vpop.trf.xlu0
        %v1742 = vpop.trf.xlu0
        %v1743 = vpop.trf.xlu0
        %v1744 = vpop.trf.xlu0
        %v1745 = vpop.trf.xlu0
        %v1746 = vpop.trf.xlu0
        %v1747 = vpop.trf.xlu0
        %1748 = vxpose.xlu0.b32.start [1/16] %v1713, 128
        %1749 = vxpose.xlu0.b32.cont [2/16] 0.0, 128
        %1750 = vxpose.xlu0.b32.cont [3/16] 0.0, 128
        %1751 = vxpose.xlu0.b32.cont [4/16] 0.0, 128
        %1752 = vxpose.xlu0.b32.cont [5/16] 0.0, 128
        %1753 = vxpose.xlu0.b32.cont [6/16] 0.0, 128
        %1754 = vxpose.xlu0.b32.cont [7/16] 0.0, 128
        %1755 = vxpose.xlu0.b32.cont [8/16] 0.0, 128
        %1756 = vxpose.xlu0.b32.cont [9/16] 0.0, 128
        %1757 = vxpose.xlu0.b32.cont [10/16] 0.0, 128
        %1758 = vxpose.xlu0.b32.cont [11/16] 0.0, 128
        %1759 = vxpose.xlu0.b32.cont [12/16] 0.0, 128
        %1760 = vxpose.xlu0.b32.cont [13/16] 0.0, 128
        %1761 = vxpose.xlu0.b32.cont [14/16] 0.0, 128
        %1762 = vxpose.xlu0.b32.cont [15/16] 0.0, 128
        %1763 = vxpose.xlu0.b32.end [16/16] 0.0, 128
        %v1764 = vpop.trf.xlu0
        %v1765 = vpop.trf.xlu0
        %v1766 = vpop.trf.xlu0
        %v1767 = vpop.trf.xlu0
        %v1768 = vpop.trf.xlu0
        %v1769 = vpop.trf.xlu0
        %v1770 = vpop.trf.xlu0
        %v1771 = vpop.trf.xlu0
        %v1772 = vpop.trf.xlu0
        %v1773 = vpop.trf.xlu0
        %v1774 = vpop.trf.xlu0
        %v1775 = vpop.trf.xlu0
        %v1776 = vpop.trf.xlu0
        %v1777 = vpop.trf.xlu0
        %v1778 = vpop.trf.xlu0
        %v1779 = vpop.trf.xlu0
        %1780 = vxpose.xlu0.b32.start [1/16] %v1714, 128
        %1781 = vxpose.xlu0.b32.cont [2/16] 0.0, 128
        %1782 = vxpose.xlu0.b32.cont [3/16] 0.0, 128
        %1783 = vxpose.xlu0.b32.cont [4/16] 0.0, 128
        %1784 = vxpose.xlu0.b32.cont [5/16] 0.0, 128
        %1785 = vxpose.xlu0.b32.cont [6/16] 0.0, 128
        %1786 = vxpose.xlu0.b32.cont [7/16] 0.0, 128
        %1787 = vxpose.xlu0.b32.cont [8/16] 0.0, 128
        %1788 = vxpose.xlu0.b32.cont [9/16] 0.0, 128
        %1789 = vxpose.xlu0.b32.cont [10/16] 0.0, 128
        %1790 = vxpose.xlu0.b32.cont [11/16] 0.0, 128
        %1791 = vxpose.xlu0.b32.cont [12/16] 0.0, 128
        %1792 = vxpose.xlu0.b32.cont [13/16] 0.0, 128
        %1793 = vxpose.xlu0.b32.cont [14/16] 0.0, 128
        %1794 = vxpose.xlu0.b32.cont [15/16] 0.0, 128
        %1795 = vxpose.xlu0.b32.end [16/16] 0.0, 128
        %v1796 = vpop.trf.xlu0
        %v1797 = vpop.trf.xlu0
        %v1798 = vpop.trf.xlu0
        %v1799 = vpop.trf.xlu0
        %v1800 = vpop.trf.xlu0
        %v1801 = vpop.trf.xlu0
        %v1802 = vpop.trf.xlu0
        %v1803 = vpop.trf.xlu0
        %v1804 = vpop.trf.xlu0
        %v1805 = vpop.trf.xlu0
        %v1806 = vpop.trf.xlu0
        %v1807 = vpop.trf.xlu0
        %v1808 = vpop.trf.xlu0
        %v1809 = vpop.trf.xlu0
        %v1810 = vpop.trf.xlu0
        %v1811 = vpop.trf.xlu0
        %1812 = vxpose.xlu0.b32.start [1/16] %v1715, 128
        %1813 = vxpose.xlu0.b32.cont [2/16] 0.0, 128
        %1814 = vxpose.xlu0.b32.cont [3/16] 0.0, 128
        %1815 = vxpose.xlu0.b32.cont [4/16] 0.0, 128
        %1816 = vxpose.xlu0.b32.cont [5/16] 0.0, 128
        %1817 = vxpose.xlu0.b32.cont [6/16] 0.0, 128
        %1818 = vxpose.xlu0.b32.cont [7/16] 0.0, 128
        %1819 = vxpose.xlu0.b32.cont [8/16] 0.0, 128
        %1820 = vxpose.xlu0.b32.cont [9/16] 0.0, 128
        %1821 = vxpose.xlu0.b32.cont [10/16] 0.0, 128
        %1822 = vxpose.xlu0.b32.cont [11/16] 0.0, 128
        %1823 = vxpose.xlu0.b32.cont [12/16] 0.0, 128
        %1824 = vxpose.xlu0.b32.cont [13/16] 0.0, 128
        %1825 = vxpose.xlu0.b32.cont [14/16] 0.0, 128
        %1826 = vxpose.xlu0.b32.cont [15/16] 0.0, 128
        %1827 = vxpose.xlu0.b32.end [16/16] 0.0, 128
        %v1828 = vpop.trf.xlu0
        %v1829 = vpop.trf.xlu0
        %v1830 = vpop.trf.xlu0
        %v1831 = vpop.trf.xlu0
        %v1832 = vpop.trf.xlu0
        %v1833 = vpop.trf.xlu0
        %v1834 = vpop.trf.xlu0
        %v1835 = vpop.trf.xlu0
        %v1836 = vpop.trf.xlu0
        %v1837 = vpop.trf.xlu0
        %v1838 = vpop.trf.xlu0
        %v1839 = vpop.trf.xlu0
        %v1840 = vpop.trf.xlu0
        %v1841 = vpop.trf.xlu0
        %v1842 = vpop.trf.xlu0
        %v1843 = vpop.trf.xlu0
        %1844 = vxpose.xlu0.b32.start [1/16] %v1732, 128
        %1845 = vxpose.xlu0.b32.cont [2/16] %v1764, 128
        %1846 = vxpose.xlu0.b32.cont [3/16] %v1796, 128
        %1847 = vxpose.xlu0.b32.cont [4/16] %v1828, 128
        %1848 = vxpose.xlu0.b32.cont [5/16] 0.0, 128
        %1849 = vxpose.xlu0.b32.cont [6/16] 0.0, 128
        %1850 = vxpose.xlu0.b32.cont [7/16] 0.0, 128
        %1851 = vxpose.xlu0.b32.cont [8/16] 0.0, 128
        %1852 = vxpose.xlu0.b32.cont [9/16] 0.0, 128
        %1853 = vxpose.xlu0.b32.cont [10/16] 0.0, 128
        %1854 = vxpose.xlu0.b32.cont [11/16] 0.0, 128
        %1855 = vxpose.xlu0.b32.cont [12/16] 0.0, 128
        %1856 = vxpose.xlu0.b32.cont [13/16] 0.0, 128
        %1857 = vxpose.xlu0.b32.cont [14/16] 0.0, 128
        %1858 = vxpose.xlu0.b32.cont [15/16] 0.0, 128
        %1859 = vxpose.xlu0.b32.end [16/16] 0.0, 128
        %v1860 = vpop.trf.xlu0
        %v1861 = vpop.trf.xlu0
        %v1862 = vpop.trf.xlu0
        %v1863 = vpop.trf.xlu0
        %v1864 = vpop.trf.xlu0
        %v1865 = vpop.trf.xlu0
        %v1866 = vpop.trf.xlu0
        %v1867 = vpop.trf.xlu0
        %v1868 = vpop.trf.xlu0
        %v1869 = vpop.trf.xlu0
        %v1870 = vpop.trf.xlu0
        %v1871 = vpop.trf.xlu0
        %v1872 = vpop.trf.xlu0
        %v1873 = vpop.trf.xlu0
        %v1874 = vpop.trf.xlu0
        %v1875 = vpop.trf.xlu0
        %v1876 = vld [vmem:[%s7] sm:$0xff]
        %v1877 = vld [vmem:[%s7 + $0x8] sm:$0xff]
        %v1878 = vld [vmem:[%s7 + $0x10] sm:$0xff]
        %v1879 = vld [vmem:[%s7 + $0x18] sm:$0xff]
        %v1880 = vld [vmem:[%s8] sm:$0x1]
        %v1882 = vperm.slane %v1880, 0
        %v1885 = vsel %vm799, %v1860, 0
        %1887 = vmatpush.msra.mxu0 0.0
        %1888 = vmatpush.msra.mxu0 0.0
        %1889 = vmatpush.msra.mxu0 0.0
        %1890 = vmatpush.msra.mxu0 0.0
        %1891 = vmatpush.msra.mxu0 0.0
        %1892 = vmatpush.msra.mxu0 0.0
        %1893 = vmatpush.msra.mxu0 0.0
        %1894 = vmatpush.msra.mxu0 0.0
        %1895 = vmatpush.msra.mxu0 0.0
        %1896 = vmatpush.msra.mxu0 0.0
        %1897 = vmatpush.msra.mxu0 0.0
        %1898 = vmatpush.msra.mxu0 0.0
        %1899 = vmatpush.msra.mxu0 %v1879
        %1900 = vmatpush.msra.mxu0 %v1878
        %1901 = vmatpush.msra.mxu0 %v1877
        %1902 = vmatpush.msra.mxu0 %v1876
        %1903 = vmatmul.f32.gmra.mxu0 %v1885
        %v1904 = vpop.f32.mrf.mxu0
        %v1905 = vadd.f32 %v1882, %v1904
        %1906 = vdwg.mxu0
        %v1907 = vadd.f32 %v788, %v1905
        %v1908 = vld [vmem:[%s9] sm:$0x1]
        %v1909 = vld [vmem:[%s10] sm:$0x1]
        %v1910 = vsel %vm799, %v1907, 0.0
        %1911 = vadd.xlane.f32.xlu0 %v1910
        %v1912 = vpop.xlane.xlu0 %1911
        %v1913 = vrcp.pop 32.0
        %v1914 = vmul.f32 32.0, %v1913
        %v1915 = vsub.f32 1.0, %v1914
        %v1916 = vmul.f32 %v1913, %v1915
        %v1917 = vadd.f32 %v1913, %v1916
        %vm1918 = vweird.f32 %v1913
        %v1919 = vsel %vm1918, %v1913, %v1917
        %v1920 = vmul.f32 %v1912, %v1919
        %v1921 = vsub.f32 %v1907, %v1920
        %v1922 = vmul.f32 %v1921, %v1921
        %v1923 = vsel %vm799, %v1922, 0.0
        %1924 = vadd.xlane.f32.xlu0 %v1923
        %v1925 = vpop.xlane.xlu0 %1924
        %v1926 = vmul.f32 %v1925, %v1919
        %v1927 = vadd.f32 %v1926, 1e-05
        %v1928 = vrsqrt.pop %v1927
        %v1929 = vmul.f32 %v1928, %v1927
        %v1930 = vmul.f32 %v1929, %v1928
        %v1931 = vmul.f32 0.5, %v1930
        %v1932 = vsub.f32 1.5, %v1931
        %v1933 = vmul.f32 %v1928, %v1932
        %vm1934 = vweird.f32 %v1927
        %vm1935 = vweird.f32 %v1928
        %vm1936 = vmor %vm1934, %vm1935
        %v1937 = vsel %vm1936, %v1928, %v1933
        %v1938 = vmul.f32 %v1921, %v1937
        %v1940 = vperm.slane %v1908, 0
        %v1942 = vmul.f32 %v1938, %v1940
        %v1944 = vperm.slane %v1909, 0
        %v1946 = vadd.f32 %v1942, %v1944
        %v1947 = vld [vmem:[%s11] sm:$0xff]
        %v1948 = vld [vmem:[%s11 + $0x8] sm:$0xff]
        %v1949 = vld [vmem:[%s11 + $0x10] sm:$0xff]
        %v1950 = vld [vmem:[%s11 + $0x18] sm:$0xff]
        %v1951 = vld [vmem:[%s12] sm:$0x1]
        %v1953 = vperm.slane %v1951, 0
        %v1956 = vsel %vm799, %v1946, 0
        %1958 = vmatpush.msra.mxu0 0.0
        %1959 = vmatpush.msra.mxu0 0.0
        %1960 = vmatpush.msra.mxu0 0.0
        %1961 = vmatpush.msra.mxu0 0.0
        %1962 = vmatpush.msra.mxu0 0.0
        %1963 = vmatpush.msra.mxu0 0.0
        %1964 = vmatpush.msra.mxu0 0.0
        %1965 = vmatpush.msra.mxu0 0.0
        %1966 = vmatpush.msra.mxu0 0.0
        %1967 = vmatpush.msra.mxu0 0.0
        %1968 = vmatpush.msra.mxu0 0.0
        %1969 = vmatpush.msra.mxu0 0.0
        %1970 = vmatpush.msra.mxu0 %v1950
        %1971 = vmatpush.msra.mxu0 %v1949
        %1972 = vmatpush.msra.mxu0 %v1948
        %1973 = vmatpush.msra.mxu0 %v1947
        %1974 = vmatmul.f32.gmra.mxu0 %v1956
        %v1975 = vpop.f32.mrf.mxu0
        %v1976 = vadd.f32 %v1953, %v1975
        %1977 = vdwg.mxu0
        %v1978 = vmul.f32 %v1976, 0.5
        %v1979 = vmul.f32 %v1976, 0.044715
        %v1980 = vmul.f32 %v1979, %v1976
        %v1981 = vmul.f32 %v1980, %v1976
        %v1982 = vadd.f32 %v1976, %v1981
        %v1983 = vmul.f32 %v1982, 0.7978846
        %v1984 = vtanh.pop %v1983
        %v1985 = vadd.f32 %v1984, 1.0
        %v1986 = vmul.f32 %v1978, %v1985
        %v1987 = vld [vmem:[%s13] sm:$0xff]
        %v1988 = vld [vmem:[%s13 + $0x8] sm:$0xff]
        %v1989 = vld [vmem:[%s13 + $0x10] sm:$0xff]
        %v1990 = vld [vmem:[%s13 + $0x18] sm:$0xff]
        %v1991 = vld [vmem:[%s13 + $0x20] sm:$0xff]
        %v1992 = vld [vmem:[%s13 + $0x28] sm:$0xff]
        %v1993 = vld [vmem:[%s13 + $0x30] sm:$0xff]
        %v1994 = vld [vmem:[%s13 + $0x38] sm:$0xff]
        %v1995 = vld [vmem:[%s13 + $0x40] sm:$0xff]
        %v1996 = vld [vmem:[%s13 + $0x48] sm:$0xff]
        %v1997 = vld [vmem:[%s13 + $0x50] sm:$0xff]
        %v1998 = vld [vmem:[%s13 + $0x58] sm:$0xff]
        %v1999 = vld [vmem:[%s13 + $0x60] sm:$0xff]
        %v2000 = vld [vmem:[%s13 + $0x68] sm:$0xff]
        %v2001 = vld [vmem:[%s13 + $0x70] sm:$0xff]
        %v2002 = vld [vmem:[%s13 + $0x78] sm:$0xff]
        %v2003 = vld [vmem:[%s14] sm:$0x1]
        %v2005 = vperm.slane %v2003, 0
        %2007 = vmatpush.msra.mxu0 %v2002
        %2008 = vmatpush.msra.mxu0 %v2001
        %2009 = vmatpush.msra.mxu0 %v2000
        %2010 = vmatpush.msra.mxu0 %v1999
        %2011 = vmatpush.msra.mxu0 %v1998
        %2012 = vmatpush.msra.mxu0 %v1997
        %2013 = vmatpush.msra.mxu0 %v1996
        %2014 = vmatpush.msra.mxu0 %v1995
        %2015 = vmatpush.msra.mxu0 %v1994
        %2016 = vmatpush.msra.mxu0 %v1993
        %2017 = vmatpush.msra.mxu0 %v1992
        %2018 = vmatpush.msra.mxu0 %v1991
        %2019 = vmatpush.msra.mxu0 %v1990
        %2020 = vmatpush.msra.mxu0 %v1989
        %2021 = vmatpush.msra.mxu0 %v1988
        %2022 = vmatpush.msra.mxu0 %v1987
        %2023 = vmatmul.f32.gmra.mxu0 %v1986
        %v2024 = vpop.f32.mrf.mxu0
        %v2025 = vadd.f32 %v2005, %v2024
        %2026 = vdwg.mxu0
        %v2027 = vadd.f32 %v1907, %v2025
        %2028 = vst.msk [vmem:[%s499] sm:$0xff] %vm799, %v2027
        %s2029 = sand.u32 %s371, 1
        %s2030 = scalar_lea.sflag [#allocation9], %s2029
        %s2031 = sand.u32 %s371, 1
        %s2032 = smul.addr %s2031, 8
        %s2033 = scalar_lea.vmem [#allocation8], %s2032
        // Predicated region
        $region92: #{tpu_custom_call.1} parent=79 // pred_check
          %p2034 = pneg %p381
        $region93: #{tpu_custom_call.1} parent=79 // pred_check_branch
          %2036 = sbr.rel (%p2034) target = $region95
        $region94: #{tpu_custom_call.1} parent=79 // pred_region
          %2038 = vsyncadd %s2030, 0
          %s2039 = sadd.s32 %s34, %s33
          %s2040 = smul.addr %s2039, 8
          %s2041 = scalar_lea.hbm %s15, %s2040
          %s2043 = sshll.u32 %s2033, 4
          %s2044 = int_to_ptr.vmem [resolvable:$true] %s2043
          %s2045 = sshll.u32 %s2041, 4
          %s2046 = int_to_ptr.hbm [resolvable:$true] %s2045
          %2048 = dma.vmem_to_hbm [thread:$0]  %s2044, 128, %s2046, %s2030
        $region95: #{tpu_custom_call.1} parent=79 // pred_fallthru
          _
      $region80: #{tpu_custom_call.1} parent=5 // pred_fallthru
        _
      %p2049 = scmp.le.s32.totalorder 2, %s24
      // Predicated region
      $region96: #{tpu_custom_call.1} parent=5 // pred_check
        %p2050 = pneg %p2049
      $region97: #{tpu_custom_call.1} parent=5 // pred_check_branch
        %2052 = sbr.rel (%p2050) target = $region99
      $region98: #{tpu_custom_call.1} parent=5 // pred_region
        %s2053 = ssub.s32 %s24, 2
        // Predicated region
        $region100: #{tpu_custom_call.1} parent=98 // pred_check
          %p2054 = pneg %p387
        $region101: #{tpu_custom_call.1} parent=98 // pred_check_branch
          %2056 = sbr.rel (%p2054) target = $region103
        $region102: #{tpu_custom_call.1} parent=98 // pred_region
          %s2057 = sand.u32 %s372, 1
          %s2058 = scalar_lea.sflag [#allocation9], %s2057
          %s2059 = sand.u32 %s372, 1
          %s2060 = smul.addr %s2059, 8
          %s2061 = scalar_lea.vmem [#allocation8], %s2060
          %2063 = dma.done %s2058, 128
        $region103: #{tpu_custom_call.1} parent=98 // pred_fallthru
          _
      $region99: #{tpu_custom_call.1} parent=5 // pred_fallthru
        _
    $region6: #{tpu_custom_call.1} parent=1 // loop_footer
      %s28 = sadd.s32 1, %s24
    $region7: #{tpu_custom_call.1} parent=1 // loop_footer_branch
      %23 = sbr.rel target = $region3
    $region8: #{tpu_custom_call.1} parent=1 // loop_exit
      _
    %2064 = vsyncpa [#allocation9], 1
    %s2065 = scalar_lea.sflag [#allocation9], 1
    %2066 = vsyncpa %s2065, 1

</llo_original>
